<compile_context>
chip_gen: v7x
topology: tpu7x:2x2x1
jax: 0.10.0
libtpu: 0.0.40
codegen_flags: <defaults>
</compile_context>

<pallas_src>
import numpy as np
import jax
import jax.numpy as jnp
from jax.experimental import pallas as pl
from jax.experimental.pallas import tpu as pltpu


# ---------------------------------------------------------------------------
# host-built constants: interior masks + one-hot selector matrices
# ---------------------------------------------------------------------------
def _build_constants(H, W, NB):
    HP, WP = H + 2, W + 2
    P1 = HP * WP
    Ho, Wo = H // 2, W // 2
    HP2, WP2 = Ho + 2, Wo + 2
    P2 = HP2 * WP2
    S1, S2 = NB * P1, NB * P2
    S1e = S1 + 2 * WP + 2                  # extra tail so pool shifts stay in-bounds

    mask1 = np.zeros((1, S1e), np.float32)
    mask2 = np.zeros((1, S2), np.float32)
    spool = np.zeros((S1, S2), np.float32)             # pool-window top-left -> stage-2 pos
    sout = np.zeros((S2, NB * Ho * Wo), np.float32)    # stage-2 interior -> dense output
    for b in range(NB):
        for r in range(1, H + 1):
            mask1[0, b * P1 + r * WP + 1: b * P1 + r * WP + 1 + W] = 1.0
        for r in range(1, Ho + 1):
            mask2[0, b * P2 + r * WP2 + 1: b * P2 + r * WP2 + 1 + Wo] = 1.0
        for ho in range(Ho):
            for wo in range(Wo):
                q = b * P1 + (2 * ho) * WP + (2 * wo)
                p = b * P2 + (ho + 1) * WP2 + (wo + 1)
                spool[q, p] = 1.0
                sout[p, b * Ho * Wo + ho * Wo + wo] = 1.0
    return (jnp.asarray(mask1), jnp.asarray(mask2),
            jnp.asarray(spool), jnp.asarray(sout))


def _prep_conv(w_oihw, b, c8):
    """OIHW (Cout,Cin,3,3) -> packed (C8, 9*C8) weights + (C8,1) bias."""
    cout, cin = w_oihw.shape[0], w_oihw.shape[1]
    wt = jnp.transpose(w_oihw, (2, 3, 0, 1)).reshape(9, cout, cin)   # t = kh*3+kw
    wt = jnp.pad(wt, ((0, 0), (0, c8 - cout), (0, c8 - cin)))
    wp = jnp.transpose(wt, (1, 0, 2)).reshape(c8, 9 * c8)
    bt = jnp.pad(b, (0, c8 - cout)).reshape(c8, 1)
    return wp, bt


def _pick_nb(N, HoWo, P1, P2, cap=8):
    """Images per grid step: prefer lane-dense outputs, keep selectors small,
    and keep >=2 grid steps when possible (both TensorCores on v7x)."""
    cands = [nb for nb in range(1, min(N, cap) + 1)
             if N % nb == 0 and (nb * P1) * (nb * P2) * 4 <= (4 << 20)]
    if not cands:
        cands = [1]
    dense = [nb for nb in cands if (nb * HoWo) % 128 == 0]
    pool = dense if dense else cands
    multi = [nb for nb in pool if N // nb >= 2]
    return max(multi) if multi else max(pool)


# ---------------------------------------------------------------------------
# fused ImpalaBlock kernel (per grid step: NB images, all stages in VMEM)
# ---------------------------------------------------------------------------
def _make_kernel(H, W, C8, NB):
    HP, WP = H + 2, W + 2
    P1 = HP * WP
    Ho, Wo = H // 2, W // 2
    HP2, WP2 = Ho + 2, Wo + 2
    P2 = HP2 * WP2
    S1, S2 = NB * P1, NB * P2
    Gp = 2 * WP + 2                      # pool read reach
    S1e = S1 + Gp                        # conv1 / pool-input span (tail masked)
    Gx = WP + 1                          # conv tap reach into the input guard
    G2 = WP2 + 1                         # stage-2 guard

    def kernel(x_ref, w_ref, b_ref, spool_ref, sout_ref, m1_ref, m2_ref,
               o_ref, buf1, bx, bt):
        int1 = m1_ref[...] != 0.0        # (1, S1e) interior mask, stage 1
        int2 = m2_ref[...] != 0.0        # (1, S2)  interior mask, stage 2

        def conv9(load, base, wp, span, ci):
            # 9 shifted taps stacked on the sublane axis -> single K=9*C8 dot.
            taps = []
            for kh in range(3):
                for kw in range(3):
                    d = (kh - 1) * wp + (kw - 1)
                    taps.append(load(base + d, span))
            stacked = jnp.concatenate(taps, axis=0)          # (9*C8, span)
            return jnp.dot(w_ref[ci], stacked,
                           preferred_element_type=jnp.float32) + b_ref[ci]

        # ---- first conv (Cin -> Cout), taps read directly from the input ---
        y = conv9(lambda s, n: x_ref[0, :, pl.ds(s, n)], Gx, WP, S1e, 0)
        # pad ring / slab tail -> very negative finite sentinel so the pool
        # never selects padding (conv outputs never get near -1e30).
        buf1[...] = jnp.where(int1, y, -1e30)

        # ---- 3x3 / stride-2 / pad-1 max pool, separable ---------------------
        sext = S1 + 2 * WP
        hmax = jnp.maximum(jnp.maximum(buf1[:, pl.ds(0, sext)],
                                       buf1[:, pl.ds(1, sext)]),
                           buf1[:, pl.ds(2, sext)])
        m = jnp.maximum(jnp.maximum(hmax[:, 0:S1],
                                    hmax[:, WP:WP + S1]),
                        hmax[:, 2 * WP:2 * WP + S1])
        # stride-2 subsample + scatter into the padded stage-2 layout with a
        # single one-hot selector matmul (block-diagonal over the NB images).
        bx[:, pl.ds(G2, S2)] = jnp.dot(m, spool_ref[...],
                                       preferred_element_type=jnp.float32)

        def load_from(ref):
            return lambda s, n: ref[:, pl.ds(s, n)]

        def res_block(ci_a, ci_b):
            x_in = bx[:, pl.ds(G2, S2)]
            bt[:, pl.ds(G2, S2)] = jnp.maximum(x_in, 0.0)          # ReLU once
            h1 = conv9(load_from(bt), G2, WP2, S2, ci_a)
            bt[:, pl.ds(G2, S2)] = jnp.where(int2, jnp.maximum(h1, 0.0), 0.0)
            h2 = conv9(load_from(bt), G2, WP2, S2, ci_b)
            return jnp.where(int2, h2 + x_in, 0.0)

        bx[:, pl.ds(G2, S2)] = res_block(1, 2)
        r2 = res_block(3, 4)

        # ---- interior -> dense (C8, NB*Ho*Wo): one lane-dense store ---------
        o_ref[0] = jnp.dot(r2, sout_ref[...],
                           preferred_element_type=jnp.float32).astype(o_ref.dtype)

    return kernel


# ---------------------------------------------------------------------------
# wrapper: parameter prep + pallas_call
# ---------------------------------------------------------------------------
def impala_block(x_nchw, params, nb=None):
    N, Cin, H, W = x_nchw.shape
    Cout = params["first_w"].shape[0]
    assert H % 2 == 0 and W % 2 == 0
    C8 = max(8, -(-max(Cin, Cout) // 8) * 8)

    HP, WP = H + 2, W + 2
    Ho, Wo = H // 2, W // 2
    HP2, WP2 = Ho + 2, Wo + 2
    P1, P2 = HP * WP, HP2 * WP2
    if nb is None:
        nb = _pick_nb(N, Ho * Wo, P1, P2)
    assert N % nb == 0
    G = N // nb
    S1, S2 = nb * P1, nb * P2
    Gp = 2 * WP + 2
    S1e = S1 + Gp
    Gx = WP + 1
    L1x = S1e + 2 * Gx
    G2 = WP2 + 1
    L2 = S2 + 2 * G2

    convs = [(params["first_w"], params["first_b"]),
             (params["res1"]["w1"], params["res1"]["b1"]),
             (params["res1"]["w2"], params["res1"]["b2"]),
             (params["res2"]["w1"], params["res2"]["b1"]),
             (params["res2"]["w2"], params["res2"]["b2"])]
    ws, bs = zip(*[_prep_conv(w, b, C8) for (w, b) in convs])
    w_all = jnp.stack(ws)                  # (5, C8, 9*C8)
    b_all = jnp.stack(bs)                  # (5, C8, 1)

    mask1, mask2, spool, sout = _build_constants(H, W, nb)

    # input -> (groups, C8 channels on sublanes, NB padded images on lanes)
    xg = x_nchw.astype(jnp.float32).reshape(G, nb, Cin, H, W)
    xg = jnp.transpose(xg, (0, 2, 1, 3, 4))                        # (G,Cin,NB,H,W)
    xg = jnp.pad(xg, ((0, 0), (0, C8 - Cin), (0, 0), (1, 1), (1, 1)))
    xg = xg.reshape(G, C8, S1)
    xg = jnp.pad(xg, ((0, 0), (0, 0), (Gx, Gx + Gp)))              # (G, C8, L1x)

    kernel = _make_kernel(H, W, C8, nb)

    out = pl.pallas_call(
        kernel,
        out_shape=jax.ShapeDtypeStruct((G, C8, nb * Ho * Wo), jnp.float32),
        grid=(G,),
        in_specs=[
            pl.BlockSpec((1, C8, L1x), lambda n: (n, 0, 0)),
            pl.BlockSpec((5, C8, 9 * C8), lambda n: (0, 0, 0)),
            pl.BlockSpec((5, C8, 1), lambda n: (0, 0, 0)),
            pl.BlockSpec((S1, S2), lambda n: (0, 0)),
            pl.BlockSpec((S2, nb * Ho * Wo), lambda n: (0, 0)),
            pl.BlockSpec((1, S1e), lambda n: (0, 0)),
            pl.BlockSpec((1, S2), lambda n: (0, 0)),
        ],
        out_specs=pl.BlockSpec((1, C8, nb * Ho * Wo), lambda n: (n, 0, 0)),
        scratch_shapes=[
            pltpu.VMEM((C8, S1e), jnp.float32),   # conv1 output / pool input
            pltpu.VMEM((C8, L2), jnp.float32),    # stage-2 residual input
            pltpu.VMEM((C8, L2), jnp.float32),    # stage-2 relu'd temp
        ],
        compiler_params=pltpu.CompilerParams(
            dimension_semantics=("parallel",)),
    )(xg, w_all, b_all, spool, sout, mask1, mask2)

    out = out[:, :Cout, :].reshape(G, Cout, nb, Ho, Wo)
    out = jnp.transpose(out, (0, 2, 1, 3, 4)).reshape(N, Cout, Ho, Wo)
    return out


# ---------------------------------------------------------------------------
# parameter init (PyTorch nn.Conv2d default: U(-1/sqrt(fan_in), 1/sqrt(fan_in)))
# ---------------------------------------------------------------------------
def _init_conv(key, cin, cout):
    kw_, kb_ = jax.random.split(key)
    bound = 1.0 / float(cin * 9) ** 0.5
    w = jax.random.uniform(kw_, (cout, cin, 3, 3), jnp.float32, -bound, bound)
    b = jax.random.uniform(kb_, (cout,), jnp.float32, -bound, bound)
    return w, b


def init_impala_params(key, in_channel, out_channel):
    keys = jax.random.split(key, 5)
    fw, fb = _init_conv(keys[0], in_channel, out_channel)
    r1w1, r1b1 = _init_conv(keys[1], out_channel, out_channel)
    r1w2, r1b2 = _init_conv(keys[2], out_channel, out_channel)
    r2w1, r2b1 = _init_conv(keys[3], out_channel, out_channel)
    r2w2, r2b2 = _init_conv(keys[4], out_channel, out_channel)
    return {
        "first_w": fw, "first_b": fb,
        "res1": {"w1": r1w1, "b1": r1b1, "w2": r1w2, "b2": r1b2},
        "res2": {"w1": r2w1, "b1": r2b1, "w2": r2w2, "b2": r2b2},
    }


# ---------------------------------------------------------------------------
# pure-JAX reference (NCHW) for the correctness check
# ---------------------------------------------------------------------------
def _conv_ref(x, w, b):
    y = jax.lax.conv_general_dilated(
        x, w, window_strides=(1, 1), padding=((1, 1), (1, 1)),
        dimension_numbers=("NCHW", "OIHW", "NCHW"))
    return y + b.reshape(1, -1, 1, 1)


def _pool_ref(x):
    return jax.lax.reduce_window(
        x, -jnp.inf, jax.lax.max,
        window_dimensions=(1, 1, 3, 3), window_strides=(1, 1, 2, 2),
        padding=((0, 0), (0, 0), (1, 1), (1, 1)))


def _res_ref(x, p):
    y = _conv_ref(jnp.maximum(x, 0.0), p["w1"], p["b1"])
    y = _conv_ref(jnp.maximum(y, 0.0), p["w2"], p["b2"])
    return y + x


def impala_block_ref(x, params):
    x = _conv_ref(x, params["first_w"], params["first_b"])
    x = _pool_ref(x)
    x = _res_ref(x, params["res1"])
    return _res_ref(x, params["res2"])


# ---------------------------------------------------------------------------
if __name__ == "__main__":
    N, Cin, Cout, H, W = 2, 4, 8, 16, 16

    root = jax.random.PRNGKey(0)
    k_in, k_params = jax.random.split(root)
    x = jax.random.normal(k_in, (N, Cin, H, W), jnp.float32)   # NCHW
    params = init_impala_params(k_params, Cin, Cout)

    out = jax.block_until_ready(impala_block(x, params))
    ref = jax.block_until_ready(impala_block_ref(x, params))

    assert out.shape == (N, Cout, H // 2, W // 2), out.shape
    max_err = float(jnp.max(jnp.abs(out - ref)))
    assert jnp.allclose(out, ref, rtol=2e-4, atol=2e-4), max_err
    print("KERNEL_OK")
</pallas_src>

<mosaic_0001>
module attributes {stable_mosaic.version = 11 : i64} {
  func.func @kernel(%arg0: i32, %arg1: memref<1x8x724xf32, #tpu.memory_space<vmem>>, %arg2: memref<5x8x72xf32, #tpu.memory_space<vmem>>, %arg3: memref<5x8x1xf32, #tpu.memory_space<vmem>>, %arg4: memref<648x200xf32, #tpu.memory_space<vmem>>, %arg5: memref<200x128xf32, #tpu.memory_space<vmem>>, %arg6: memref<1x686xf32, #tpu.memory_space<vmem>>, %arg7: memref<1x200xf32, #tpu.memory_space<vmem>>, %arg8: memref<1x8x128xf32, #tpu.memory_space<vmem>>, %arg9: memref<8x686xf32, #tpu.memory_space<vmem>>, %arg10: memref<8x222xf32, #tpu.memory_space<vmem>>, %arg11: memref<8x222xf32, #tpu.memory_space<vmem>>) attributes {dimension_semantics = [#tpu.dimension_semantics<parallel>], iteration_bounds = array<i64: 1>, scalar_prefetch = 0 : i64, scratch_operands = 3 : i64, tpu.core_type = #tpu.core_type<tc>, window_params = [{transform_indices = @transform_0, window_bounds = array<i64: 1, 8, 724>}, {pipeline_mode = #tpu.pipeline_mode<synchronous>, transform_indices = @transform_1, window_bounds = array<i64: 5, 8, 72>}, {pipeline_mode = #tpu.pipeline_mode<synchronous>, transform_indices = @transform_2, window_bounds = array<i64: 5, 8, 1>}, {pipeline_mode = #tpu.pipeline_mode<synchronous>, transform_indices = @transform_3, window_bounds = array<i64: 648, 200>}, {pipeline_mode = #tpu.pipeline_mode<synchronous>, transform_indices = @transform_4, window_bounds = array<i64: 200, 128>}, {pipeline_mode = #tpu.pipeline_mode<synchronous>, transform_indices = @transform_5, window_bounds = array<i64: 1, 686>}, {pipeline_mode = #tpu.pipeline_mode<synchronous>, transform_indices = @transform_6, window_bounds = array<i64: 1, 200>}, {transform_indices = @transform_7, window_bounds = array<i64: 1, 8, 128>}]} {
    %c0 = arith.constant 0 : index
    %c0_0 = arith.constant 0 : index
    %0 = vector.load %arg6[%c0, %c0_0] : memref<1x686xf32, #tpu.memory_space<vmem>>, vector<1x686xf32>
    %cst = arith.constant 0.000000e+00 : f32
    %1 = vector.broadcast %cst : f32 to vector<1x686xf32>
    %2 = arith.cmpf one, %0, %1 : vector<1x686xf32>
    %c0_1 = arith.constant 0 : index
    %c0_2 = arith.constant 0 : index
    %3 = vector.load %arg7[%c0_1, %c0_2] : memref<1x200xf32, #tpu.memory_space<vmem>>, vector<1x200xf32>
    %cst_3 = arith.constant 0.000000e+00 : f32
    %4 = vector.broadcast %cst_3 : f32 to vector<1x200xf32>
    %5 = arith.cmpf one, %3, %4 : vector<1x200xf32>
    %c0_4 = arith.constant 0 : index
    %c0_5 = arith.constant 0 : index
    %c0_6 = arith.constant 0 : index
    %6 = vector.load %arg1[%c0_4, %c0_5, %c0_6] : memref<1x8x724xf32, #tpu.memory_space<vmem>>, vector<1x8x686xf32>
    %7 = vector.shape_cast %6 : vector<1x8x686xf32> to vector<8x686xf32>
    %c0_7 = arith.constant 0 : index
    %c0_8 = arith.constant 0 : index
    %c1 = arith.constant 1 : index
    %8 = vector.load %arg1[%c0_7, %c0_8, %c1] : memref<1x8x724xf32, #tpu.memory_space<vmem>>, vector<1x8x686xf32>
    %9 = vector.shape_cast %8 : vector<1x8x686xf32> to vector<8x686xf32>
    %c0_9 = arith.constant 0 : index
    %c0_10 = arith.constant 0 : index
    %c2 = arith.constant 2 : index
    %10 = vector.load %arg1[%c0_9, %c0_10, %c2] : memref<1x8x724xf32, #tpu.memory_space<vmem>>, vector<1x8x686xf32>
    %11 = vector.shape_cast %10 : vector<1x8x686xf32> to vector<8x686xf32>
    %c0_11 = arith.constant 0 : index
    %c0_12 = arith.constant 0 : index
    %c18 = arith.constant 18 : index
    %12 = vector.load %arg1[%c0_11, %c0_12, %c18] : memref<1x8x724xf32, #tpu.memory_space<vmem>>, vector<1x8x686xf32>
    %13 = vector.shape_cast %12 : vector<1x8x686xf32> to vector<8x686xf32>
    %c0_13 = arith.constant 0 : index
    %c0_14 = arith.constant 0 : index
    %c19 = arith.constant 19 : index
    %14 = vector.load %arg1[%c0_13, %c0_14, %c19] : memref<1x8x724xf32, #tpu.memory_space<vmem>>, vector<1x8x686xf32>
    %15 = vector.shape_cast %14 : vector<1x8x686xf32> to vector<8x686xf32>
    %c0_15 = arith.constant 0 : index
    %c0_16 = arith.constant 0 : index
    %c20 = arith.constant 20 : index
    %16 = vector.load %arg1[%c0_15, %c0_16, %c20] : memref<1x8x724xf32, #tpu.memory_space<vmem>>, vector<1x8x686xf32>
    %17 = vector.shape_cast %16 : vector<1x8x686xf32> to vector<8x686xf32>
    %c0_17 = arith.constant 0 : index
    %c0_18 = arith.constant 0 : index
    %c36 = arith.constant 36 : index
    %18 = vector.load %arg1[%c0_17, %c0_18, %c36] : memref<1x8x724xf32, #tpu.memory_space<vmem>>, vector<1x8x686xf32>
    %19 = vector.shape_cast %18 : vector<1x8x686xf32> to vector<8x686xf32>
    %c0_19 = arith.constant 0 : index
    %c0_20 = arith.constant 0 : index
    %c37 = arith.constant 37 : index
    %20 = vector.load %arg1[%c0_19, %c0_20, %c37] : memref<1x8x724xf32, #tpu.memory_space<vmem>>, vector<1x8x686xf32>
    %21 = vector.shape_cast %20 : vector<1x8x686xf32> to vector<8x686xf32>
    %c0_21 = arith.constant 0 : index
    %c0_22 = arith.constant 0 : index
    %c38 = arith.constant 38 : index
    %22 = vector.load %arg1[%c0_21, %c0_22, %c38] : memref<1x8x724xf32, #tpu.memory_space<vmem>>, vector<1x8x686xf32>
    %23 = vector.shape_cast %22 : vector<1x8x686xf32> to vector<8x686xf32>
    %24 = tpu.concatenate %7, %9, %11, %13, %15, %17, %19, %21, %23 in 0 : vector<8x686xf32>, vector<8x686xf32>, vector<8x686xf32>, vector<8x686xf32>, vector<8x686xf32>, vector<8x686xf32>, vector<8x686xf32>, vector<8x686xf32>, vector<8x686xf32> -> vector<72x686xf32>
    %c0_23 = arith.constant 0 : index
    %c0_24 = arith.constant 0 : index
    %c0_25 = arith.constant 0 : index
    %25 = vector.load %arg2[%c0_23, %c0_24, %c0_25] : memref<5x8x72xf32, #tpu.memory_space<vmem>>, vector<1x8x72xf32>
    %26 = vector.shape_cast %25 : vector<1x8x72xf32> to vector<8x72xf32>
    %cst_26 = arith.constant dense<0.000000e+00> : vector<8x686xf32>
    %27 = tpu.matmul %26, %24, %cst_26 {dimension_numbers = #tpu.dot_dimension_numbers<[1], [0], [0], [1], [0, 0, 1, 1], [], []>} : vector<8x72xf32>, vector<72x686xf32>, vector<8x686xf32> -> vector<8x686xf32>
    %c0_27 = arith.constant 0 : index
    %c0_28 = arith.constant 0 : index
    %c0_29 = arith.constant 0 : index
    %28 = vector.load %arg3[%c0_27, %c0_28, %c0_29] : memref<5x8x1xf32, #tpu.memory_space<vmem>>, vector<1x8x1xf32>
    %29 = vector.shape_cast %28 : vector<1x8x1xf32> to vector<8x1xf32>
    %30 = vector.broadcast %29 : vector<8x1xf32> to vector<8x686xf32>
    %31 = arith.addf %27, %30 : vector<8x686xf32>
    %cst_30 = arith.constant -1.000000e+30 : f32
    %32 = vector.shape_cast %2 : vector<1x686xi1> to vector<1x686xi1>
    %33 = vector.broadcast %32 : vector<1x686xi1> to vector<8x686xi1>
    %34 = vector.broadcast %cst_30 : f32 to vector<8x686xf32>
    %35 = arith.select %33, %31, %34 : vector<8x686xi1>, vector<8x686xf32>
    %c0_31 = arith.constant 0 : index
    %c0_32 = arith.constant 0 : index
    %36 = vector.load %arg9[%c0_31, %c0_32] : memref<8x686xf32, #tpu.memory_space<vmem>>, vector<8x686xf32>
    tpu.vector_store %arg9[%c0_31, %c0_32], %35 {strides = array<i32>} : memref<8x686xf32, #tpu.memory_space<vmem>>, vector<8x686xf32>,
    %c0_33 = arith.constant 0 : index
    %c0_34 = arith.constant 0 : index
    %37 = vector.load %arg9[%c0_33, %c0_34] : memref<8x686xf32, #tpu.memory_space<vmem>>, vector<8x684xf32>
    %c0_35 = arith.constant 0 : index
    %c1_36 = arith.constant 1 : index
    %38 = vector.load %arg9[%c0_35, %c1_36] : memref<8x686xf32, #tpu.memory_space<vmem>>, vector<8x684xf32>
    %39 = arith.maximumf %37, %38 : vector<8x684xf32>
    %c0_37 = arith.constant 0 : index
    %c2_38 = arith.constant 2 : index
    %40 = vector.load %arg9[%c0_37, %c2_38] : memref<8x686xf32, #tpu.memory_space<vmem>>, vector<8x684xf32>
    %41 = arith.maximumf %39, %40 : vector<8x684xf32>
    %42 = vector.extract_strided_slice %41 {offsets = [0, 0], sizes = [8, 648], strides = [1, 1]} : vector<8x684xf32> to vector<8x648xf32>
    %43 = vector.extract_strided_slice %41 {offsets = [0, 18], sizes = [8, 648], strides = [1, 1]} : vector<8x684xf32> to vector<8x648xf32>
    %44 = arith.maximumf %42, %43 : vector<8x648xf32>
    %45 = vector.extract_strided_slice %41 {offsets = [0, 36], sizes = [8, 648], strides = [1, 1]} : vector<8x684xf32> to vector<8x648xf32>
    %46 = arith.maximumf %44, %45 : vector<8x648xf32>
    %c0_39 = arith.constant 0 : index
    %c0_40 = arith.constant 0 : index
    %47 = vector.load %arg4[%c0_39, %c0_40] : memref<648x200xf32, #tpu.memory_space<vmem>>, vector<648x200xf32>
    %cst_41 = arith.constant dense<0.000000e+00> : vector<8x200xf32>
    %48 = tpu.matmul %46, %47, %cst_41 {dimension_numbers = #tpu.dot_dimension_numbers<[1], [0], [0], [1], [0, 0, 1, 1], [], []>} : vector<8x648xf32>, vector<648x200xf32>, vector<8x200xf32> -> vector<8x200xf32>
    %c0_42 = arith.constant 0 : index
    %c11 = arith.constant 11 : index
    %49 = vector.load %arg10[%c0_42, %c11] : memref<8x222xf32, #tpu.memory_space<vmem>>, vector<8x200xf32>
    tpu.vector_store %arg10[%c0_42, %c11], %48 {strides = array<i32>} : memref<8x222xf32, #tpu.memory_space<vmem>>, vector<8x200xf32>,
    %c0_43 = arith.constant 0 : index
    %c11_44 = arith.constant 11 : index
    %50 = vector.load %arg10[%c0_43, %c11_44] : memref<8x222xf32, #tpu.memory_space<vmem>>, vector<8x200xf32>
    %cst_45 = arith.constant 0.000000e+00 : f32
    %51 = vector.broadcast %cst_45 : f32 to vector<8x200xf32>
    %52 = arith.maximumf %50, %51 : vector<8x200xf32>
    %c0_46 = arith.constant 0 : index
    %c11_47 = arith.constant 11 : index
    %53 = vector.load %arg11[%c0_46, %c11_47] : memref<8x222xf32, #tpu.memory_space<vmem>>, vector<8x200xf32>
    tpu.vector_store %arg11[%c0_46, %c11_47], %52 {strides = array<i32>} : memref<8x222xf32, #tpu.memory_space<vmem>>, vector<8x200xf32>,
    %c0_48 = arith.constant 0 : index
    %c0_49 = arith.constant 0 : index
    %54 = vector.load %arg11[%c0_48, %c0_49] : memref<8x222xf32, #tpu.memory_space<vmem>>, vector<8x200xf32>
    %c0_50 = arith.constant 0 : index
    %c1_51 = arith.constant 1 : index
    %55 = vector.load %arg11[%c0_50, %c1_51] : memref<8x222xf32, #tpu.memory_space<vmem>>, vector<8x200xf32>
    %c0_52 = arith.constant 0 : index
    %c2_53 = arith.constant 2 : index
    %56 = vector.load %arg11[%c0_52, %c2_53] : memref<8x222xf32, #tpu.memory_space<vmem>>, vector<8x200xf32>
    %c0_54 = arith.constant 0 : index
    %c10 = arith.constant 10 : index
    %57 = vector.load %arg11[%c0_54, %c10] : memref<8x222xf32, #tpu.memory_space<vmem>>, vector<8x200xf32>
    %c0_55 = arith.constant 0 : index
    %c11_56 = arith.constant 11 : index
    %58 = vector.load %arg11[%c0_55, %c11_56] : memref<8x222xf32, #tpu.memory_space<vmem>>, vector<8x200xf32>
    %c0_57 = arith.constant 0 : index
    %c12 = arith.constant 12 : index
    %59 = vector.load %arg11[%c0_57, %c12] : memref<8x222xf32, #tpu.memory_space<vmem>>, vector<8x200xf32>
    %c0_58 = arith.constant 0 : index
    %c20_59 = arith.constant 20 : index
    %60 = vector.load %arg11[%c0_58, %c20_59] : memref<8x222xf32, #tpu.memory_space<vmem>>, vector<8x200xf32>
    %c0_60 = arith.constant 0 : index
    %c21 = arith.constant 21 : index
    %61 = vector.load %arg11[%c0_60, %c21] : memref<8x222xf32, #tpu.memory_space<vmem>>, vector<8x200xf32>
    %c0_61 = arith.constant 0 : index
    %c22 = arith.constant 22 : index
    %62 = vector.load %arg11[%c0_61, %c22] : memref<8x222xf32, #tpu.memory_space<vmem>>, vector<8x200xf32>
    %63 = tpu.concatenate %54, %55, %56, %57, %58, %59, %60, %61, %62 in 0 : vector<8x200xf32>, vector<8x200xf32>, vector<8x200xf32>, vector<8x200xf32>, vector<8x200xf32>, vector<8x200xf32>, vector<8x200xf32>, vector<8x200xf32>, vector<8x200xf32> -> vector<72x200xf32>
    %c1_62 = arith.constant 1 : index
    %c0_63 = arith.constant 0 : index
    %c0_64 = arith.constant 0 : index
    %64 = vector.load %arg2[%c1_62, %c0_63, %c0_64] : memref<5x8x72xf32, #tpu.memory_space<vmem>>, vector<1x8x72xf32>
    %65 = vector.shape_cast %64 : vector<1x8x72xf32> to vector<8x72xf32>
    %cst_65 = arith.constant dense<0.000000e+00> : vector<8x200xf32>
    %66 = tpu.matmul %65, %63, %cst_65 {dimension_numbers = #tpu.dot_dimension_numbers<[1], [0], [0], [1], [0, 0, 1, 1], [], []>} : vector<8x72xf32>, vector<72x200xf32>, vector<8x200xf32> -> vector<8x200xf32>
    %c1_66 = arith.constant 1 : index
    %c0_67 = arith.constant 0 : index
    %c0_68 = arith.constant 0 : index
    %67 = vector.load %arg3[%c1_66, %c0_67, %c0_68] : memref<5x8x1xf32, #tpu.memory_space<vmem>>, vector<1x8x1xf32>
    %68 = vector.shape_cast %67 : vector<1x8x1xf32> to vector<8x1xf32>
    %69 = vector.broadcast %68 : vector<8x1xf32> to vector<8x200xf32>
    %70 = arith.addf %66, %69 : vector<8x200xf32>
    %cst_69 = arith.constant 0.000000e+00 : f32
    %71 = vector.broadcast %cst_69 : f32 to vector<8x200xf32>
    %72 = arith.maximumf %70, %71 : vector<8x200xf32>
    %cst_70 = arith.constant 0.000000e+00 : f32
    %73 = vector.shape_cast %5 : vector<1x200xi1> to vector<1x200xi1>
    %74 = vector.broadcast %73 : vector<1x200xi1> to vector<8x200xi1>
    %75 = vector.broadcast %cst_70 : f32 to vector<8x200xf32>
    %76 = arith.select %74, %72, %75 : vector<8x200xi1>, vector<8x200xf32>
    %c0_71 = arith.constant 0 : index
    %c11_72 = arith.constant 11 : index
    %77 = vector.load %arg11[%c0_71, %c11_72] : memref<8x222xf32, #tpu.memory_space<vmem>>, vector<8x200xf32>
    tpu.vector_store %arg11[%c0_71, %c11_72], %76 {strides = array<i32>} : memref<8x222xf32, #tpu.memory_space<vmem>>, vector<8x200xf32>,
    %c0_73 = arith.constant 0 : index
    %c0_74 = arith.constant 0 : index
    %78 = vector.load %arg11[%c0_73, %c0_74] : memref<8x222xf32, #tpu.memory_space<vmem>>, vector<8x200xf32>
    %c0_75 = arith.constant 0 : index
    %c1_76 = arith.constant 1 : index
    %79 = vector.load %arg11[%c0_75, %c1_76] : memref<8x222xf32, #tpu.memory_space<vmem>>, vector<8x200xf32>
    %c0_77 = arith.constant 0 : index
    %c2_78 = arith.constant 2 : index
    %80 = vector.load %arg11[%c0_77, %c2_78] : memref<8x222xf32, #tpu.memory_space<vmem>>, vector<8x200xf32>
    %c0_79 = arith.constant 0 : index
    %c10_80 = arith.constant 10 : index
    %81 = vector.load %arg11[%c0_79, %c10_80] : memref<8x222xf32, #tpu.memory_space<vmem>>, vector<8x200xf32>
    %c0_81 = arith.constant 0 : index
    %c11_82 = arith.constant 11 : index
    %82 = vector.load %arg11[%c0_81, %c11_82] : memref<8x222xf32, #tpu.memory_space<vmem>>, vector<8x200xf32>
    %c0_83 = arith.constant 0 : index
    %c12_84 = arith.constant 12 : index
    %83 = vector.load %arg11[%c0_83, %c12_84] : memref<8x222xf32, #tpu.memory_space<vmem>>, vector<8x200xf32>
    %c0_85 = arith.constant 0 : index
    %c20_86 = arith.constant 20 : index
    %84 = vector.load %arg11[%c0_85, %c20_86] : memref<8x222xf32, #tpu.memory_space<vmem>>, vector<8x200xf32>
    %c0_87 = arith.constant 0 : index
    %c21_88 = arith.constant 21 : index
    %85 = vector.load %arg11[%c0_87, %c21_88] : memref<8x222xf32, #tpu.memory_space<vmem>>, vector<8x200xf32>
    %c0_89 = arith.constant 0 : index
    %c22_90 = arith.constant 22 : index
    %86 = vector.load %arg11[%c0_89, %c22_90] : memref<8x222xf32, #tpu.memory_space<vmem>>, vector<8x200xf32>
    %87 = tpu.concatenate %78, %79, %80, %81, %82, %83, %84, %85, %86 in 0 : vector<8x200xf32>, vector<8x200xf32>, vector<8x200xf32>, vector<8x200xf32>, vector<8x200xf32>, vector<8x200xf32>, vector<8x200xf32>, vector<8x200xf32>, vector<8x200xf32> -> vector<72x200xf32>
    %c2_91 = arith.constant 2 : index
    %c0_92 = arith.constant 0 : index
    %c0_93 = arith.constant 0 : index
    %88 = vector.load %arg2[%c2_91, %c0_92, %c0_93] : memref<5x8x72xf32, #tpu.memory_space<vmem>>, vector<1x8x72xf32>
    %89 = vector.shape_cast %88 : vector<1x8x72xf32> to vector<8x72xf32>
    %cst_94 = arith.constant dense<0.000000e+00> : vector<8x200xf32>
    %90 = tpu.matmul %89, %87, %cst_94 {dimension_numbers = #tpu.dot_dimension_numbers<[1], [0], [0], [1], [0, 0, 1, 1], [], []>} : vector<8x72xf32>, vector<72x200xf32>, vector<8x200xf32> -> vector<8x200xf32>
    %c2_95 = arith.constant 2 : index
    %c0_96 = arith.constant 0 : index
    %c0_97 = arith.constant 0 : index
    %91 = vector.load %arg3[%c2_95, %c0_96, %c0_97] : memref<5x8x1xf32, #tpu.memory_space<vmem>>, vector<1x8x1xf32>
    %92 = vector.shape_cast %91 : vector<1x8x1xf32> to vector<8x1xf32>
    %93 = vector.broadcast %92 : vector<8x1xf32> to vector<8x200xf32>
    %94 = arith.addf %90, %93 : vector<8x200xf32>
    %95 = arith.addf %94, %50 : vector<8x200xf32>
    %cst_98 = arith.constant 0.000000e+00 : f32
    %96 = vector.shape_cast %5 : vector<1x200xi1> to vector<1x200xi1>
    %97 = vector.broadcast %96 : vector<1x200xi1> to vector<8x200xi1>
    %98 = vector.broadcast %cst_98 : f32 to vector<8x200xf32>
    %99 = arith.select %97, %95, %98 : vector<8x200xi1>, vector<8x200xf32>
    %c0_99 = arith.constant 0 : index
    %c11_100 = arith.constant 11 : index
    %100 = vector.load %arg10[%c0_99, %c11_100] : memref<8x222xf32, #tpu.memory_space<vmem>>, vector<8x200xf32>
    tpu.vector_store %arg10[%c0_99, %c11_100], %99 {strides = array<i32>} : memref<8x222xf32, #tpu.memory_space<vmem>>, vector<8x200xf32>,
    %c0_101 = arith.constant 0 : index
    %c11_102 = arith.constant 11 : index
    %101 = vector.load %arg10[%c0_101, %c11_102] : memref<8x222xf32, #tpu.memory_space<vmem>>, vector<8x200xf32>
    %cst_103 = arith.constant 0.000000e+00 : f32
    %102 = vector.broadcast %cst_103 : f32 to vector<8x200xf32>
    %103 = arith.maximumf %101, %102 : vector<8x200xf32>
    %c0_104 = arith.constant 0 : index
    %c11_105 = arith.constant 11 : index
    %104 = vector.load %arg11[%c0_104, %c11_105] : memref<8x222xf32, #tpu.memory_space<vmem>>, vector<8x200xf32>
    tpu.vector_store %arg11[%c0_104, %c11_105], %103 {strides = array<i32>} : memref<8x222xf32, #tpu.memory_space<vmem>>, vector<8x200xf32>,
    %c0_106 = arith.constant 0 : index
    %c0_107 = arith.constant 0 : index
    %105 = vector.load %arg11[%c0_106, %c0_107] : memref<8x222xf32, #tpu.memory_space<vmem>>, vector<8x200xf32>
    %c0_108 = arith.constant 0 : index
    %c1_109 = arith.constant 1 : index
    %106 = vector.load %arg11[%c0_108, %c1_109] : memref<8x222xf32, #tpu.memory_space<vmem>>, vector<8x200xf32>
    %c0_110 = arith.constant 0 : index
    %c2_111 = arith.constant 2 : index
    %107 = vector.load %arg11[%c0_110, %c2_111] : memref<8x222xf32, #tpu.memory_space<vmem>>, vector<8x200xf32>
    %c0_112 = arith.constant 0 : index
    %c10_113 = arith.constant 10 : index
    %108 = vector.load %arg11[%c0_112, %c10_113] : memref<8x222xf32, #tpu.memory_space<vmem>>, vector<8x200xf32>
    %c0_114 = arith.constant 0 : index
    %c11_115 = arith.constant 11 : index
    %109 = vector.load %arg11[%c0_114, %c11_115] : memref<8x222xf32, #tpu.memory_space<vmem>>, vector<8x200xf32>
    %c0_116 = arith.constant 0 : index
    %c12_117 = arith.constant 12 : index
    %110 = vector.load %arg11[%c0_116, %c12_117] : memref<8x222xf32, #tpu.memory_space<vmem>>, vector<8x200xf32>
    %c0_118 = arith.constant 0 : index
    %c20_119 = arith.constant 20 : index
    %111 = vector.load %arg11[%c0_118, %c20_119] : memref<8x222xf32, #tpu.memory_space<vmem>>, vector<8x200xf32>
    %c0_120 = arith.constant 0 : index
    %c21_121 = arith.constant 21 : index
    %112 = vector.load %arg11[%c0_120, %c21_121] : memref<8x222xf32, #tpu.memory_space<vmem>>, vector<8x200xf32>
    %c0_122 = arith.constant 0 : index
    %c22_123 = arith.constant 22 : index
    %113 = vector.load %arg11[%c0_122, %c22_123] : memref<8x222xf32, #tpu.memory_space<vmem>>, vector<8x200xf32>
    %114 = tpu.concatenate %105, %106, %107, %108, %109, %110, %111, %112, %113 in 0 : vector<8x200xf32>, vector<8x200xf32>, vector<8x200xf32>, vector<8x200xf32>, vector<8x200xf32>, vector<8x200xf32>, vector<8x200xf32>, vector<8x200xf32>, vector<8x200xf32> -> vector<72x200xf32>
    %c3 = arith.constant 3 : index
    %c0_124 = arith.constant 0 : index
    %c0_125 = arith.constant 0 : index
    %115 = vector.load %arg2[%c3, %c0_124, %c0_125] : memref<5x8x72xf32, #tpu.memory_space<vmem>>, vector<1x8x72xf32>
    %116 = vector.shape_cast %115 : vector<1x8x72xf32> to vector<8x72xf32>
    %cst_126 = arith.constant dense<0.000000e+00> : vector<8x200xf32>
    %117 = tpu.matmul %116, %114, %cst_126 {dimension_numbers = #tpu.dot_dimension_numbers<[1], [0], [0], [1], [0, 0, 1, 1], [], []>} : vector<8x72xf32>, vector<72x200xf32>, vector<8x200xf32> -> vector<8x200xf32>
    %c3_127 = arith.constant 3 : index
    %c0_128 = arith.constant 0 : index
    %c0_129 = arith.constant 0 : index
    %118 = vector.load %arg3[%c3_127, %c0_128, %c0_129] : memref<5x8x1xf32, #tpu.memory_space<vmem>>, vector<1x8x1xf32>
    %119 = vector.shape_cast %118 : vector<1x8x1xf32> to vector<8x1xf32>
    %120 = vector.broadcast %119 : vector<8x1xf32> to vector<8x200xf32>
    %121 = arith.addf %117, %120 : vector<8x200xf32>
    %cst_130 = arith.constant 0.000000e+00 : f32
    %122 = vector.broadcast %cst_130 : f32 to vector<8x200xf32>
    %123 = arith.maximumf %121, %122 : vector<8x200xf32>
    %cst_131 = arith.constant 0.000000e+00 : f32
    %124 = vector.shape_cast %5 : vector<1x200xi1> to vector<1x200xi1>
    %125 = vector.broadcast %124 : vector<1x200xi1> to vector<8x200xi1>
    %126 = vector.broadcast %cst_131 : f32 to vector<8x200xf32>
    %127 = arith.select %125, %123, %126 : vector<8x200xi1>, vector<8x200xf32>
    %c0_132 = arith.constant 0 : index
    %c11_133 = arith.constant 11 : index
    %128 = vector.load %arg11[%c0_132, %c11_133] : memref<8x222xf32, #tpu.memory_space<vmem>>, vector<8x200xf32>
    tpu.vector_store %arg11[%c0_132, %c11_133], %127 {strides = array<i32>} : memref<8x222xf32, #tpu.memory_space<vmem>>, vector<8x200xf32>,
    %c0_134 = arith.constant 0 : index
    %c0_135 = arith.constant 0 : index
    %129 = vector.load %arg11[%c0_134, %c0_135] : memref<8x222xf32, #tpu.memory_space<vmem>>, vector<8x200xf32>
    %c0_136 = arith.constant 0 : index
    %c1_137 = arith.constant 1 : index
    %130 = vector.load %arg11[%c0_136, %c1_137] : memref<8x222xf32, #tpu.memory_space<vmem>>, vector<8x200xf32>
    %c0_138 = arith.constant 0 : index
    %c2_139 = arith.constant 2 : index
    %131 = vector.load %arg11[%c0_138, %c2_139] : memref<8x222xf32, #tpu.memory_space<vmem>>, vector<8x200xf32>
    %c0_140 = arith.constant 0 : index
    %c10_141 = arith.constant 10 : index
    %132 = vector.load %arg11[%c0_140, %c10_141] : memref<8x222xf32, #tpu.memory_space<vmem>>, vector<8x200xf32>
    %c0_142 = arith.constant 0 : index
    %c11_143 = arith.constant 11 : index
    %133 = vector.load %arg11[%c0_142, %c11_143] : memref<8x222xf32, #tpu.memory_space<vmem>>, vector<8x200xf32>
    %c0_144 = arith.constant 0 : index
    %c12_145 = arith.constant 12 : index
    %134 = vector.load %arg11[%c0_144, %c12_145] : memref<8x222xf32, #tpu.memory_space<vmem>>, vector<8x200xf32>
    %c0_146 = arith.constant 0 : index
    %c20_147 = arith.constant 20 : index
    %135 = vector.load %arg11[%c0_146, %c20_147] : memref<8x222xf32, #tpu.memory_space<vmem>>, vector<8x200xf32>
    %c0_148 = arith.constant 0 : index
    %c21_149 = arith.constant 21 : index
    %136 = vector.load %arg11[%c0_148, %c21_149] : memref<8x222xf32, #tpu.memory_space<vmem>>, vector<8x200xf32>
    %c0_150 = arith.constant 0 : index
    %c22_151 = arith.constant 22 : index
    %137 = vector.load %arg11[%c0_150, %c22_151] : memref<8x222xf32, #tpu.memory_space<vmem>>, vector<8x200xf32>
    %138 = tpu.concatenate %129, %130, %131, %132, %133, %134, %135, %136, %137 in 0 : vector<8x200xf32>, vector<8x200xf32>, vector<8x200xf32>, vector<8x200xf32>, vector<8x200xf32>, vector<8x200xf32>, vector<8x200xf32>, vector<8x200xf32>, vector<8x200xf32> -> vector<72x200xf32>
    %c4 = arith.constant 4 : index
    %c0_152 = arith.constant 0 : index
    %c0_153 = arith.constant 0 : index
    %139 = vector.load %arg2[%c4, %c0_152, %c0_153] : memref<5x8x72xf32, #tpu.memory_space<vmem>>, vector<1x8x72xf32>
    %140 = vector.shape_cast %139 : vector<1x8x72xf32> to vector<8x72xf32>
    %cst_154 = arith.constant dense<0.000000e+00> : vector<8x200xf32>
    %141 = tpu.matmul %140, %138, %cst_154 {dimension_numbers = #tpu.dot_dimension_numbers<[1], [0], [0], [1], [0, 0, 1, 1], [], []>} : vector<8x72xf32>, vector<72x200xf32>, vector<8x200xf32> -> vector<8x200xf32>
    %c4_155 = arith.constant 4 : index
    %c0_156 = arith.constant 0 : index
    %c0_157 = arith.constant 0 : index
    %142 = vector.load %arg3[%c4_155, %c0_156, %c0_157] : memref<5x8x1xf32, #tpu.memory_space<vmem>>, vector<1x8x1xf32>
    %143 = vector.shape_cast %142 : vector<1x8x1xf32> to vector<8x1xf32>
    %144 = vector.broadcast %143 : vector<8x1xf32> to vector<8x200xf32>
    %145 = arith.addf %141, %144 : vector<8x200xf32>
    %146 = arith.addf %145, %101 : vector<8x200xf32>
    %cst_158 = arith.constant 0.000000e+00 : f32
    %147 = vector.shape_cast %5 : vector<1x200xi1> to vector<1x200xi1>
    %148 = vector.broadcast %147 : vector<1x200xi1> to vector<8x200xi1>
    %149 = vector.broadcast %cst_158 : f32 to vector<8x200xf32>
    %150 = arith.select %148, %146, %149 : vector<8x200xi1>, vector<8x200xf32>
    %c0_159 = arith.constant 0 : index
    %c0_160 = arith.constant 0 : index
    %151 = vector.load %arg5[%c0_159, %c0_160] : memref<200x128xf32, #tpu.memory_space<vmem>>, vector<200x128xf32>
    %cst_161 = arith.constant dense<0.000000e+00> : vector<8x128xf32>
    %152 = tpu.matmul %150, %151, %cst_161 {dimension_numbers = #tpu.dot_dimension_numbers<[1], [0], [0], [1], [0, 0, 1, 1], [], []>} : vector<8x200xf32>, vector<200x128xf32>, vector<8x128xf32> -> vector<8x128xf32>
    %c0_162 = arith.constant 0 : index
    %c0_163 = arith.constant 0 : index
    %c0_164 = arith.constant 0 : index
    %153 = vector.load %arg8[%c0_162, %c0_163, %c0_164] : memref<1x8x128xf32, #tpu.memory_space<vmem>>, vector<1x8x128xf32>
    %154 = vector.shape_cast %153 : vector<1x8x128xf32> to vector<8x128xf32>
    %155 = vector.shape_cast %152 : vector<8x128xf32> to vector<1x8x128xf32>
    tpu.vector_store %arg8[%c0_162, %c0_163, %c0_164], %155 {strides = array<i32>} : memref<1x8x128xf32, #tpu.memory_space<vmem>>, vector<1x8x128xf32>,
    return
  }
  func.func @transform_0(%arg0: i32) -> (i32, i32, i32) {
    %c0_i32 = arith.constant 0 : i32
    %c0_i32_0 = arith.constant 0 : i32
    %c0_i32_1 = arith.constant 0 : i32
    return %arg0, %c0_i32, %c0_i32_0 : i32, i32, i32
  }
  func.func @transform_1(%arg0: i32) -> (i32, i32, i32) {
    %c0_i32 = arith.constant 0 : i32
    %c0_i32_0 = arith.constant 0 : i32
    %c0_i32_1 = arith.constant 0 : i32
    %c0_i32_2 = arith.constant 0 : i32
    return %c0_i32, %c0_i32_0, %c0_i32_1 : i32, i32, i32
  }
  func.func @transform_2(%arg0: i32) -> (i32, i32, i32) {
    %c0_i32 = arith.constant 0 : i32
    %c0_i32_0 = arith.constant 0 : i32
    %c0_i32_1 = arith.constant 0 : i32
    %c0_i32_2 = arith.constant 0 : i32
    return %c0_i32, %c0_i32_0, %c0_i32_1 : i32, i32, i32
  }
  func.func @transform_3(%arg0: i32) -> (i32, i32) {
    %c0_i32 = arith.constant 0 : i32
    %c0_i32_0 = arith.constant 0 : i32
    %c0_i32_1 = arith.constant 0 : i32
    return %c0_i32, %c0_i32_0 : i32, i32
  }
  func.func @transform_4(%arg0: i32) -> (i32, i32) {
    %c0_i32 = arith.constant 0 : i32
    %c0_i32_0 = arith.constant 0 : i32
    %c0_i32_1 = arith.constant 0 : i32
    return %c0_i32, %c0_i32_0 : i32, i32
  }
  func.func @transform_5(%arg0: i32) -> (i32, i32) {
    %c0_i32 = arith.constant 0 : i32
    %c0_i32_0 = arith.constant 0 : i32
    %c0_i32_1 = arith.constant 0 : i32
    return %c0_i32, %c0_i32_0 : i32, i32
  }
  func.func @transform_6(%arg0: i32) -> (i32, i32) {
    %c0_i32 = arith.constant 0 : i32
    %c0_i32_0 = arith.constant 0 : i32
    %c0_i32_1 = arith.constant 0 : i32
    return %c0_i32, %c0_i32_0 : i32, i32
  }
  func.func @transform_7(%arg0: i32) -> (i32, i32, i32) {
    %c0_i32 = arith.constant 0 : i32
    %c0_i32_0 = arith.constant 0 : i32
    %c0_i32_1 = arith.constant 0 : i32
    return %arg0, %c0_i32, %c0_i32_0 : i32, i32, i32
  }
}

</mosaic_0001>

<llo_original>
// kernel: tpu_custom_call.1
$region0: #{tpu_custom_call.1}
  #allocation0 [shape = 'u32[]', space=smem, size = 0x4, offset = 0x4, fixed_abs, tag = 'smem constant byte address 0x4 - core index']
  #allocation1 [shape = 'u32[144,128]{1,0:T(1,128)}', space=vmem, size = 0x12000, scoped, tag = 'internal scratch']
  #allocation2 [shape = 'f32[8,686]{1,0:T(8,128)}', space=vmem, size = 0x6000, scoped, tag = 'scratch operand']
  #allocation3 [shape = 'f32[8,222]{1,0:T(8,128)}', space=vmem, size = 0x2000, scoped, tag = 'scratch operand']
  #allocation4 [shape = 'f32[8,222]{1,0:T(8,128)}', space=vmem, size = 0x2000, scoped, tag = 'scratch operand']
  %s0 = inlined_call_operand.vmem [shape: f32[1,8,724], index: 0, kind: input, shape index: {}]
  %s1 = inlined_call_operand.vmem [shape: f32[5,8,72], index: 1, kind: input, shape index: {}]
  %s2 = inlined_call_operand.vmem [shape: f32[5,8,1], index: 2, kind: input, shape index: {}]
  %s3 = inlined_call_operand.vmem [shape: f32[648,200], index: 3, kind: input, shape index: {}]
  %s4 = inlined_call_operand.vmem [shape: f32[200,128], index: 4, kind: input, shape index: {}]
  %s5 = inlined_call_operand.vmem [shape: f32[1,686], index: 5, kind: input, shape index: {}]
  %s6 = inlined_call_operand.vmem [shape: f32[1,200], index: 6, kind: input, shape index: {}]
  %s7 = inlined_call_operand.hbm [shape: f32[1,8,128], index: 7, kind: output, shape index: {}]
  %s8 = sld [smem:[#allocation0]]
  $region38: #{tpu_custom_call.1} parent=0
    _
  %s10 = ssub.s32 1, %s8
  %s11 = scalar_select 0, %s10, %s8
  $region1: #{tpu_custom_call.1} parent=0
    #allocation5 [shape = 'u8[4096]{0}', space=vmem, size = 0x1000, scoped, tag = 'output window, operand 0, single buffered']
    #allocation6 [shape = 's32[1]{0}', space=sflag, size = 0x4, scoped, tag = 'scoped memory for tpu_custom_call.1']
    %12 = vsyncpa [#allocation6], 0
    // Predicated region
    $region2: #{tpu_custom_call.1} parent=1 // pred_check
      _
    $region3: #{tpu_custom_call.1} parent=1 // pred_check_branch
      %14 = sbr.rel (0) target = $region5
    $region4: #{tpu_custom_call.1} parent=1 // pred_region
      _
    $region5: #{tpu_custom_call.1} parent=1 // pred_fallthru
      _
    // Predicated region
    $region6: #{tpu_custom_call.1} parent=1 // pred_check
      _
    $region7: #{tpu_custom_call.1} parent=1 // pred_check_branch
      %16 = sbr.rel (0) target = $region9
    $region8: #{tpu_custom_call.1} parent=1 // pred_region
      _
    $region9: #{tpu_custom_call.1} parent=1 // pred_fallthru
      _
    // Predicated region
    $region10: #{tpu_custom_call.1} parent=1 // pred_check
      _
    $region11: #{tpu_custom_call.1} parent=1 // pred_check_branch
      %18 = sbr.rel (0) target = $region13
    $region12: #{tpu_custom_call.1} parent=1 // pred_region
      _
    $region13: #{tpu_custom_call.1} parent=1 // pred_fallthru
      _
    // Predicated region
    $region14: #{tpu_custom_call.1} parent=1 // pred_check
      _
    $region15: #{tpu_custom_call.1} parent=1 // pred_check_branch
      %20 = sbr.rel (0) target = $region17
    $region16: #{tpu_custom_call.1} parent=1 // pred_region
      _
    $region17: #{tpu_custom_call.1} parent=1 // pred_fallthru
      _
    // Predicated region
    $region18: #{tpu_custom_call.1} parent=1 // pred_check
      _
    $region19: #{tpu_custom_call.1} parent=1 // pred_check_branch
      %22 = sbr.rel (0) target = $region21
    $region20: #{tpu_custom_call.1} parent=1 // pred_region
      _
    $region21: #{tpu_custom_call.1} parent=1 // pred_fallthru
      _
    // Predicated region
    $region22: #{tpu_custom_call.1} parent=1 // pred_check
      _
    $region23: #{tpu_custom_call.1} parent=1 // pred_check_branch
      %24 = sbr.rel (0) target = $region25
    $region24: #{tpu_custom_call.1} parent=1 // pred_region
      _
    $region25: #{tpu_custom_call.1} parent=1 // pred_fallthru
      _
    // Predicated region
    $region26: #{tpu_custom_call.1} parent=1 // pred_check
      _
    $region27: #{tpu_custom_call.1} parent=1 // pred_check_branch
      %26 = sbr.rel (0) target = $region29
    $region28: #{tpu_custom_call.1} parent=1 // pred_region
      _
    $region29: #{tpu_custom_call.1} parent=1 // pred_fallthru
      _
    %v27 = vld [vmem:[%s5] sm:$0x3f]
    %vm28 = vcmp.ne.f32.partialorder %v27, 0.0
    %v29 = vld [vmem:[%s6] sm:$0x3]
    %vm30 = vcmp.ne.f32.partialorder %v29, 0.0
    %v31 = vld [vmem:[%s0] sm:$0xff]
    %v32 = vld [vmem:[%s0 + $0x8] sm:$0xff]
    %v33 = vld [vmem:[%s0 + $0x10] sm:$0xff]
    %v34 = vld [vmem:[%s0 + $0x18] sm:$0xff]
    %v35 = vld [vmem:[%s0 + $0x20] sm:$0xff]
    %v36 = vld [vmem:[%s0 + $0x28] sm:$0xff]
    %43 = vrot.lane.b32.xlu0 %v31, 127
    %v44 = vpop.permute.xlu0 %43
    %45 = vrot.lane.b32.xlu0 %v32, 127
    %v46 = vpop.permute.xlu0 %45
    %47 = vrot.lane.b32.xlu0 %v33, 127
    %v48 = vpop.permute.xlu0 %47
    %49 = vrot.lane.b32.xlu0 %v34, 127
    %v50 = vpop.permute.xlu0 %49
    %51 = vrot.lane.b32.xlu0 %v35, 127
    %v52 = vpop.permute.xlu0 %51
    %53 = vrot.lane.b32.xlu0 %v36, 127
    %v54 = vpop.permute.xlu0 %53
    %vm55 = vcmask 1039360
    %v56 = vsel %vm55, %v44, %v46
    %v57 = vsel %vm55, %v46, %v48
    %v58 = vsel %vm55, %v48, %v50
    %v59 = vsel %vm55, %v50, %v52
    %v60 = vsel %vm55, %v52, %v54
    %67 = vrot.lane.b32.xlu0 %v31, 126
    %v68 = vpop.permute.xlu0 %67
    %69 = vrot.lane.b32.xlu0 %v32, 126
    %v70 = vpop.permute.xlu0 %69
    %71 = vrot.lane.b32.xlu0 %v33, 126
    %v72 = vpop.permute.xlu0 %71
    %73 = vrot.lane.b32.xlu0 %v34, 126
    %v74 = vpop.permute.xlu0 %73
    %75 = vrot.lane.b32.xlu0 %v35, 126
    %v76 = vpop.permute.xlu0 %75
    %77 = vrot.lane.b32.xlu0 %v36, 126
    %v78 = vpop.permute.xlu0 %77
    %vm79 = vcmask 1031168
    %v80 = vsel %vm79, %v68, %v70
    %v81 = vsel %vm79, %v70, %v72
    %v82 = vsel %vm79, %v72, %v74
    %v83 = vsel %vm79, %v74, %v76
    %v84 = vsel %vm79, %v76, %v78
    %91 = vrot.lane.b32.xlu0 %v31, 110
    %v92 = vpop.permute.xlu0 %91
    %93 = vrot.lane.b32.xlu0 %v32, 110
    %v94 = vpop.permute.xlu0 %93
    %95 = vrot.lane.b32.xlu0 %v33, 110
    %v96 = vpop.permute.xlu0 %95
    %97 = vrot.lane.b32.xlu0 %v34, 110
    %v98 = vpop.permute.xlu0 %97
    %99 = vrot.lane.b32.xlu0 %v35, 110
    %v100 = vpop.permute.xlu0 %99
    %101 = vrot.lane.b32.xlu0 %v36, 110
    %v102 = vpop.permute.xlu0 %101
    %vm103 = vcmask 900096
    %v104 = vsel %vm103, %v92, %v94
    %v105 = vsel %vm103, %v94, %v96
    %v106 = vsel %vm103, %v96, %v98
    %v107 = vsel %vm103, %v98, %v100
    %v108 = vsel %vm103, %v100, %v102
    %115 = vrot.lane.b32.xlu0 %v31, 109
    %v116 = vpop.permute.xlu0 %115
    %117 = vrot.lane.b32.xlu0 %v32, 109
    %v118 = vpop.permute.xlu0 %117
    %119 = vrot.lane.b32.xlu0 %v33, 109
    %v120 = vpop.permute.xlu0 %119
    %121 = vrot.lane.b32.xlu0 %v34, 109
    %v122 = vpop.permute.xlu0 %121
    %123 = vrot.lane.b32.xlu0 %v35, 109
    %v124 = vpop.permute.xlu0 %123
    %125 = vrot.lane.b32.xlu0 %v36, 109
    %v126 = vpop.permute.xlu0 %125
    %vm127 = vcmask 891904
    %v128 = vsel %vm127, %v116, %v118
    %v129 = vsel %vm127, %v118, %v120
    %v130 = vsel %vm127, %v120, %v122
    %v131 = vsel %vm127, %v122, %v124
    %v132 = vsel %vm127, %v124, %v126
    %139 = vrot.lane.b32.xlu0 %v31, 108
    %v140 = vpop.permute.xlu0 %139
    %141 = vrot.lane.b32.xlu0 %v32, 108
    %v142 = vpop.permute.xlu0 %141
    %143 = vrot.lane.b32.xlu0 %v33, 108
    %v144 = vpop.permute.xlu0 %143
    %145 = vrot.lane.b32.xlu0 %v34, 108
    %v146 = vpop.permute.xlu0 %145
    %147 = vrot.lane.b32.xlu0 %v35, 108
    %v148 = vpop.permute.xlu0 %147
    %149 = vrot.lane.b32.xlu0 %v36, 108
    %v150 = vpop.permute.xlu0 %149
    %vm151 = vcmask 883712
    %v152 = vsel %vm151, %v140, %v142
    %v153 = vsel %vm151, %v142, %v144
    %v154 = vsel %vm151, %v144, %v146
    %v155 = vsel %vm151, %v146, %v148
    %v156 = vsel %vm151, %v148, %v150
    %163 = vrot.lane.b32.xlu0 %v31, 92
    %v164 = vpop.permute.xlu0 %163
    %165 = vrot.lane.b32.xlu0 %v32, 92
    %v166 = vpop.permute.xlu0 %165
    %167 = vrot.lane.b32.xlu0 %v33, 92
    %v168 = vpop.permute.xlu0 %167
    %169 = vrot.lane.b32.xlu0 %v34, 92
    %v170 = vpop.permute.xlu0 %169
    %171 = vrot.lane.b32.xlu0 %v35, 92
    %v172 = vpop.permute.xlu0 %171
    %173 = vrot.lane.b32.xlu0 %v36, 92
    %v174 = vpop.permute.xlu0 %173
    %vm175 = vcmask 752640
    %v176 = vsel %vm175, %v164, %v166
    %v177 = vsel %vm175, %v166, %v168
    %v178 = vsel %vm175, %v168, %v170
    %v179 = vsel %vm175, %v170, %v172
    %v180 = vsel %vm175, %v172, %v174
    %187 = vrot.lane.b32.xlu0 %v31, 91
    %v188 = vpop.permute.xlu0 %187
    %189 = vrot.lane.b32.xlu0 %v32, 91
    %v190 = vpop.permute.xlu0 %189
    %191 = vrot.lane.b32.xlu0 %v33, 91
    %v192 = vpop.permute.xlu0 %191
    %193 = vrot.lane.b32.xlu0 %v34, 91
    %v194 = vpop.permute.xlu0 %193
    %195 = vrot.lane.b32.xlu0 %v35, 91
    %v196 = vpop.permute.xlu0 %195
    %197 = vrot.lane.b32.xlu0 %v36, 91
    %v198 = vpop.permute.xlu0 %197
    %vm199 = vcmask 744448
    %v200 = vsel %vm199, %v188, %v190
    %v201 = vsel %vm199, %v190, %v192
    %v202 = vsel %vm199, %v192, %v194
    %v203 = vsel %vm199, %v194, %v196
    %v204 = vsel %vm199, %v196, %v198
    %211 = vrot.lane.b32.xlu0 %v31, 90
    %v212 = vpop.permute.xlu0 %211
    %213 = vrot.lane.b32.xlu0 %v32, 90
    %v214 = vpop.permute.xlu0 %213
    %215 = vrot.lane.b32.xlu0 %v33, 90
    %v216 = vpop.permute.xlu0 %215
    %217 = vrot.lane.b32.xlu0 %v34, 90
    %v218 = vpop.permute.xlu0 %217
    %219 = vrot.lane.b32.xlu0 %v35, 90
    %v220 = vpop.permute.xlu0 %219
    %221 = vrot.lane.b32.xlu0 %v36, 90
    %v222 = vpop.permute.xlu0 %221
    %vm223 = vcmask 736256
    %v224 = vsel %vm223, %v212, %v214
    %v225 = vsel %vm223, %v214, %v216
    %v226 = vsel %vm223, %v216, %v218
    %v227 = vsel %vm223, %v218, %v220
    %v228 = vsel %vm223, %v220, %v222
    %v235 = vld [vmem:[%s1] sm:$0xff]
    %v236 = vld [vmem:[%s2] sm:$0xff]
    %238 = vset.pattern.permute.xlu0 0
    %239 = vperm.xlu0 %238, %v236
    %v240 = vpop.permute.xlu0 %239
    %vm242 = vcmask 588800
    %v244 = vsel %vm242, %v235, 0
    %246 = vmatprep.subr.mxu0 %v32
    %247 = vmatpush1.msra.mxu0 %v31
    %248 = vmatprep.subr.mxu0 %v57
    %249 = vmatpush1.msra.mxu0 %v56
    %250 = vmatprep.subr.mxu0 %v81
    %251 = vmatpush1.msra.mxu0 %v80
    %252 = vmatprep.subr.mxu0 %v105
    %253 = vmatpush1.msra.mxu0 %v104
    %254 = vmatprep.subr.mxu0 %v129
    %255 = vmatpush1.msra.mxu0 %v128
    %256 = vmatprep.subr.mxu0 %v153
    %257 = vmatpush1.msra.mxu0 %v152
    %258 = vmatprep.subr.mxu0 %v177
    %259 = vmatpush1.msra.mxu0 %v176
    %260 = vmatprep.subr.mxu0 %v201
    %261 = vmatpush1.msra.mxu0 %v200
    %262 = vmatprep.subr.mxu0 %v225
    %263 = vmatpush1.msra.mxu0 %v224
    %264 = vmatprep.subr.mxu0 0.0
    %265 = vmatpush1.msra.mxu0 0.0
    %266 = vmatprep.subr.mxu0 0.0
    %267 = vmatpush1.msra.mxu0 0.0
    %268 = vmatprep.subr.mxu0 0.0
    %269 = vmatpush1.msra.mxu0 0.0
    %270 = vmatprep.subr.mxu0 0.0
    %271 = vmatpush1.msra.mxu0 0.0
    %272 = vmatprep.subr.mxu0 0.0
    %273 = vmatpush1.msra.mxu0 0.0
    %274 = vmatprep.subr.mxu0 0.0
    %275 = vmatpush1.msra.mxu0 0.0
    %276 = vmatprep.subr.mxu0 0.0
    %277 = vmatpush1.msra.mxu0 0.0
    %278 = vmatprep.subr.mxu0 0.0
    %279 = vmatpush1.msra.mxu0 0.0
    %280 = vmatprep.subr.mxu0 0.0
    %281 = vmatpush1.msra.mxu0 0.0
    %282 = vmatprep.subr.mxu0 0.0
    %283 = vmatpush1.msra.mxu0 0.0
    %284 = vmatprep.subr.mxu0 0.0
    %285 = vmatpush1.msra.mxu0 0.0
    %286 = vmatprep.subr.mxu0 0.0
    %287 = vmatpush1.msra.mxu0 0.0
    %288 = vmatprep.subr.mxu0 0.0
    %289 = vmatpush1.msra.mxu0 0.0
    %290 = vmatprep.subr.mxu0 0.0
    %291 = vmatpush1.msra.mxu0 0.0
    %292 = vmatprep.subr.mxu0 0.0
    %293 = vmatpush1.msra.mxu0 0.0
    %294 = vmatprep.subr.mxu0 0.0
    %295 = vmatpush1.msra.mxu0 0.0
    %296 = vmatprep.subr.mxu0 0.0
    %297 = vmatpush1.msra.mxu0 0.0
    %298 = vmatprep.subr.mxu0 0.0
    %299 = vmatpush1.msra.mxu0 0.0
    %300 = vmatprep.subr.mxu0 0.0
    %301 = vmatpush1.msra.mxu0 0.0
    %302 = vmatprep.subr.mxu0 0.0
    %303 = vmatpush1.msra.mxu0 0.0
    %304 = vmatprep.subr.mxu0 0.0
    %305 = vmatpush1.msra.mxu0 0.0
    %306 = vmatprep.subr.mxu0 0.0
    %307 = vmatpush1.msra.mxu0 0.0
    %308 = vmatprep.subr.mxu0 0.0
    %309 = vmatpush1.msra.mxu0 0.0
    %310 = vmatprep.mubr.f32.mxu0 0.0
    %311 = vmatmul.mubr.f32.gmra.mrb[0].mxu0 %v244
    %v312 = vpop.f32.mrb[0].mxu0
    %v313 = vadd.f32 %v240, %v312
    %v314 = vpop.f32.mrb[0].mxu0
    %v315 = vadd.f32 %v240, %v314
    %316 = vdwg.mxu0
    %317 = vmatprep.subr.mxu0 %v34
    %318 = vmatpush1.msra.mxu0 %v33
    %319 = vmatprep.subr.mxu0 %v59
    %320 = vmatpush1.msra.mxu0 %v58
    %321 = vmatprep.subr.mxu0 %v83
    %322 = vmatpush1.msra.mxu0 %v82
    %323 = vmatprep.subr.mxu0 %v107
    %324 = vmatpush1.msra.mxu0 %v106
    %325 = vmatprep.subr.mxu0 %v131
    %326 = vmatpush1.msra.mxu0 %v130
    %327 = vmatprep.subr.mxu0 %v155
    %328 = vmatpush1.msra.mxu0 %v154
    %329 = vmatprep.subr.mxu0 %v179
    %330 = vmatpush1.msra.mxu0 %v178
    %331 = vmatprep.subr.mxu0 %v203
    %332 = vmatpush1.msra.mxu0 %v202
    %333 = vmatprep.subr.mxu0 %v227
    %334 = vmatpush1.msra.mxu0 %v226
    %335 = vmatprep.subr.mxu0 0.0
    %336 = vmatpush1.msra.mxu0 0.0
    %337 = vmatprep.subr.mxu0 0.0
    %338 = vmatpush1.msra.mxu0 0.0
    %339 = vmatprep.subr.mxu0 0.0
    %340 = vmatpush1.msra.mxu0 0.0
    %341 = vmatprep.subr.mxu0 0.0
    %342 = vmatpush1.msra.mxu0 0.0
    %343 = vmatprep.subr.mxu0 0.0
    %344 = vmatpush1.msra.mxu0 0.0
    %345 = vmatprep.subr.mxu0 0.0
    %346 = vmatpush1.msra.mxu0 0.0
    %347 = vmatprep.subr.mxu0 0.0
    %348 = vmatpush1.msra.mxu0 0.0
    %349 = vmatprep.subr.mxu0 0.0
    %350 = vmatpush1.msra.mxu0 0.0
    %351 = vmatprep.subr.mxu0 0.0
    %352 = vmatpush1.msra.mxu0 0.0
    %353 = vmatprep.subr.mxu0 0.0
    %354 = vmatpush1.msra.mxu0 0.0
    %355 = vmatprep.subr.mxu0 0.0
    %356 = vmatpush1.msra.mxu0 0.0
    %357 = vmatprep.subr.mxu0 0.0
    %358 = vmatpush1.msra.mxu0 0.0
    %359 = vmatprep.subr.mxu0 0.0
    %360 = vmatpush1.msra.mxu0 0.0
    %361 = vmatprep.subr.mxu0 0.0
    %362 = vmatpush1.msra.mxu0 0.0
    %363 = vmatprep.subr.mxu0 0.0
    %364 = vmatpush1.msra.mxu0 0.0
    %365 = vmatprep.subr.mxu0 0.0
    %366 = vmatpush1.msra.mxu0 0.0
    %367 = vmatprep.subr.mxu0 0.0
    %368 = vmatpush1.msra.mxu0 0.0
    %369 = vmatprep.subr.mxu0 0.0
    %370 = vmatpush1.msra.mxu0 0.0
    %371 = vmatprep.subr.mxu0 0.0
    %372 = vmatpush1.msra.mxu0 0.0
    %373 = vmatprep.subr.mxu0 0.0
    %374 = vmatpush1.msra.mxu0 0.0
    %375 = vmatprep.subr.mxu0 0.0
    %376 = vmatpush1.msra.mxu0 0.0
    %377 = vmatprep.subr.mxu0 0.0
    %378 = vmatpush1.msra.mxu0 0.0
    %379 = vmatprep.subr.mxu0 0.0
    %380 = vmatpush1.msra.mxu0 0.0
    %381 = vmatprep.mubr.f32.mxu0 0.0
    %382 = vmatmul.mubr.f32.gmra.mrb[0].mxu0 %v244
    %v383 = vpop.f32.mrb[0].mxu0
    %v384 = vadd.f32 %v240, %v383
    %v385 = vpop.f32.mrb[0].mxu0
    %v386 = vadd.f32 %v240, %v385
    %387 = vdwg.mxu0
    %388 = vmatprep.subr.mxu0 %v36
    %389 = vmatpush1.msra.mxu0 %v35
    %390 = vmatprep.subr.mxu0 %v54
    %391 = vmatpush1.msra.mxu0 %v60
    %392 = vmatprep.subr.mxu0 %v78
    %393 = vmatpush1.msra.mxu0 %v84
    %394 = vmatprep.subr.mxu0 %v102
    %395 = vmatpush1.msra.mxu0 %v108
    %396 = vmatprep.subr.mxu0 %v126
    %397 = vmatpush1.msra.mxu0 %v132
    %398 = vmatprep.subr.mxu0 %v150
    %399 = vmatpush1.msra.mxu0 %v156
    %400 = vmatprep.subr.mxu0 %v174
    %401 = vmatpush1.msra.mxu0 %v180
    %402 = vmatprep.subr.mxu0 %v198
    %403 = vmatpush1.msra.mxu0 %v204
    %404 = vmatprep.subr.mxu0 %v222
    %405 = vmatpush1.msra.mxu0 %v228
    %406 = vmatprep.subr.mxu0 0.0
    %407 = vmatpush1.msra.mxu0 0.0
    %408 = vmatprep.subr.mxu0 0.0
    %409 = vmatpush1.msra.mxu0 0.0
    %410 = vmatprep.subr.mxu0 0.0
    %411 = vmatpush1.msra.mxu0 0.0
    %412 = vmatprep.subr.mxu0 0.0
    %413 = vmatpush1.msra.mxu0 0.0
    %414 = vmatprep.subr.mxu0 0.0
    %415 = vmatpush1.msra.mxu0 0.0
    %416 = vmatprep.subr.mxu0 0.0
    %417 = vmatpush1.msra.mxu0 0.0
    %418 = vmatprep.subr.mxu0 0.0
    %419 = vmatpush1.msra.mxu0 0.0
    %420 = vmatprep.subr.mxu0 0.0
    %421 = vmatpush1.msra.mxu0 0.0
    %422 = vmatprep.subr.mxu0 0.0
    %423 = vmatpush1.msra.mxu0 0.0
    %424 = vmatprep.subr.mxu0 0.0
    %425 = vmatpush1.msra.mxu0 0.0
    %426 = vmatprep.subr.mxu0 0.0
    %427 = vmatpush1.msra.mxu0 0.0
    %428 = vmatprep.subr.mxu0 0.0
    %429 = vmatpush1.msra.mxu0 0.0
    %430 = vmatprep.subr.mxu0 0.0
    %431 = vmatpush1.msra.mxu0 0.0
    %432 = vmatprep.subr.mxu0 0.0
    %433 = vmatpush1.msra.mxu0 0.0
    %434 = vmatprep.subr.mxu0 0.0
    %435 = vmatpush1.msra.mxu0 0.0
    %436 = vmatprep.subr.mxu0 0.0
    %437 = vmatpush1.msra.mxu0 0.0
    %438 = vmatprep.subr.mxu0 0.0
    %439 = vmatpush1.msra.mxu0 0.0
    %440 = vmatprep.subr.mxu0 0.0
    %441 = vmatpush1.msra.mxu0 0.0
    %442 = vmatprep.subr.mxu0 0.0
    %443 = vmatpush1.msra.mxu0 0.0
    %444 = vmatprep.subr.mxu0 0.0
    %445 = vmatpush1.msra.mxu0 0.0
    %446 = vmatprep.subr.mxu0 0.0
    %447 = vmatpush1.msra.mxu0 0.0
    %448 = vmatprep.subr.mxu0 0.0
    %449 = vmatpush1.msra.mxu0 0.0
    %450 = vmatprep.subr.mxu0 0.0
    %451 = vmatpush1.msra.mxu0 0.0
    %452 = vmatprep.mubr.f32.mxu0 0.0
    %453 = vmatmul.mubr.f32.gmra.mrb[0].mxu0 %v244
    %v454 = vpop.f32.mrb[0].mxu0
    %v455 = vadd.f32 %v240, %v454
    %v456 = vpop.f32.mrb[0].mxu0
    %v457 = vadd.f32 %v240, %v456
    %458 = vdwg.mxu0
    %v459 = vsel %vm28, 1, 0
    %v460 = vlaneseq
    %v461 = vshrl.u32 %v460, 7
    %v462 = vsub.s32 0, %v461
    %v463 = vrot.slane %v459, %v462
    %v464 = vlaneseq
    %v465 = vshrl.u32 %v464, 7
    %v466 = vsub.s32 1, %v465
    %v467 = vrot.slane %v459, %v466
    %v468 = vlaneseq
    %v469 = vshrl.u32 %v468, 7
    %v470 = vsub.s32 2, %v469
    %v471 = vrot.slane %v459, %v470
    %v472 = vlaneseq
    %v473 = vshrl.u32 %v472, 7
    %v474 = vsub.s32 3, %v473
    %v475 = vrot.slane %v459, %v474
    %v476 = vlaneseq
    %v477 = vshrl.u32 %v476, 7
    %v478 = vsub.s32 4, %v477
    %v479 = vrot.slane %v459, %v478
    %v480 = vlaneseq
    %v481 = vshrl.u32 %v480, 7
    %v482 = vsub.s32 5, %v481
    %v483 = vrot.slane %v459, %v482
    %vm484 = vcmp.eq.s32.totalorder %v463, 1
    %vm485 = vcmp.eq.s32.totalorder %v467, 1
    %vm486 = vcmp.eq.s32.totalorder %v471, 1
    %vm487 = vcmp.eq.s32.totalorder %v475, 1
    %vm488 = vcmp.eq.s32.totalorder %v479, 1
    %vm489 = vcmp.eq.s32.totalorder %v483, 1
    %v490 = vsel %vm484, %v313, -1e+30
    %v491 = vsel %vm485, %v315, -1e+30
    %v492 = vsel %vm486, %v384, -1e+30
    %v493 = vsel %vm487, %v386, -1e+30
    %v494 = vsel %vm488, %v455, -1e+30
    %v495 = vsel %vm489, %v457, -1e+30
    %496 = vst [vmem:[#allocation2] sm:$0xff] %v490
    %497 = vst [vmem:[#allocation2 + $0x8] sm:$0xff] %v491
    %498 = vst [vmem:[#allocation2 + $0x10] sm:$0xff] %v492
    %499 = vst [vmem:[#allocation2 + $0x18] sm:$0xff] %v493
    %500 = vst [vmem:[#allocation2 + $0x20] sm:$0xff] %v494
    %vm501 = vcmask 375808
    %502 = vst.msk [vmem:[#allocation2 + $0x28] sm:$0xff] %vm501, %v495
    %v503 = vld [vmem:[#allocation2] sm:$0xff]
    %v504 = vld [vmem:[#allocation2 + $0x8] sm:$0xff]
    %v505 = vld [vmem:[#allocation2 + $0x10] sm:$0xff]
    %v506 = vld [vmem:[#allocation2 + $0x18] sm:$0xff]
    %v507 = vld [vmem:[#allocation2 + $0x20] sm:$0xff]
    %v508 = vld [vmem:[#allocation2 + $0x28] sm:$0xff]
    %515 = vrot.lane.b32.xlu0 %v503, 127
    %v516 = vpop.permute.xlu0 %515
    %517 = vrot.lane.b32.xlu0 %v504, 127
    %v518 = vpop.permute.xlu0 %517
    %519 = vrot.lane.b32.xlu0 %v505, 127
    %v520 = vpop.permute.xlu0 %519
    %521 = vrot.lane.b32.xlu0 %v506, 127
    %v522 = vpop.permute.xlu0 %521
    %523 = vrot.lane.b32.xlu0 %v507, 127
    %v524 = vpop.permute.xlu0 %523
    %525 = vrot.lane.b32.xlu0 %v508, 127
    %v526 = vpop.permute.xlu0 %525
    %v527 = vsel %vm55, %v516, %v518
    %v528 = vsel %vm55, %v518, %v520
    %v529 = vsel %vm55, %v520, %v522
    %v530 = vsel %vm55, %v522, %v524
    %v531 = vsel %vm55, %v524, %v526
    %v538 = vmax.f32 %v503, %v527
    %v539 = vmax.f32 %v504, %v528
    %v540 = vmax.f32 %v505, %v529
    %v541 = vmax.f32 %v506, %v530
    %v542 = vmax.f32 %v507, %v531
    %v543 = vmax.f32 %v508, %v526
    %544 = vrot.lane.b32.xlu0 %v503, 126
    %v545 = vpop.permute.xlu0 %544
    %546 = vrot.lane.b32.xlu0 %v504, 126
    %v547 = vpop.permute.xlu0 %546
    %548 = vrot.lane.b32.xlu0 %v505, 126
    %v549 = vpop.permute.xlu0 %548
    %550 = vrot.lane.b32.xlu0 %v506, 126
    %v551 = vpop.permute.xlu0 %550
    %552 = vrot.lane.b32.xlu0 %v507, 126
    %v553 = vpop.permute.xlu0 %552
    %554 = vrot.lane.b32.xlu0 %v508, 126
    %v555 = vpop.permute.xlu0 %554
    %v556 = vsel %vm79, %v545, %v547
    %v557 = vsel %vm79, %v547, %v549
    %v558 = vsel %vm79, %v549, %v551
    %v559 = vsel %vm79, %v551, %v553
    %v560 = vsel %vm79, %v553, %v555
    %v567 = vmax.f32 %v538, %v556
    %v568 = vmax.f32 %v539, %v557
    %v569 = vmax.f32 %v540, %v558
    %v570 = vmax.f32 %v541, %v559
    %v571 = vmax.f32 %v542, %v560
    %v572 = vmax.f32 %v543, %v555
    %579 = vrot.lane.b32.xlu0 %v567, 110
    %v580 = vpop.permute.xlu0 %579
    %581 = vrot.lane.b32.xlu0 %v568, 110
    %v582 = vpop.permute.xlu0 %581
    %583 = vrot.lane.b32.xlu0 %v569, 110
    %v584 = vpop.permute.xlu0 %583
    %585 = vrot.lane.b32.xlu0 %v570, 110
    %v586 = vpop.permute.xlu0 %585
    %587 = vrot.lane.b32.xlu0 %v571, 110
    %v588 = vpop.permute.xlu0 %587
    %589 = vrot.lane.b32.xlu0 %v572, 110
    %v590 = vpop.permute.xlu0 %589
    %v591 = vsel %vm103, %v580, %v582
    %v592 = vsel %vm103, %v582, %v584
    %v593 = vsel %vm103, %v584, %v586
    %v594 = vsel %vm103, %v586, %v588
    %v595 = vsel %vm103, %v588, %v590
    %v602 = vmax.f32 %v567, %v591
    %v603 = vmax.f32 %v568, %v592
    %v604 = vmax.f32 %v569, %v593
    %v605 = vmax.f32 %v570, %v594
    %v606 = vmax.f32 %v571, %v595
    %v607 = vmax.f32 %v572, %v590
    %608 = vrot.lane.b32.xlu0 %v567, 92
    %v609 = vpop.permute.xlu0 %608
    %610 = vrot.lane.b32.xlu0 %v568, 92
    %v611 = vpop.permute.xlu0 %610
    %612 = vrot.lane.b32.xlu0 %v569, 92
    %v613 = vpop.permute.xlu0 %612
    %614 = vrot.lane.b32.xlu0 %v570, 92
    %v615 = vpop.permute.xlu0 %614
    %616 = vrot.lane.b32.xlu0 %v571, 92
    %v617 = vpop.permute.xlu0 %616
    %618 = vrot.lane.b32.xlu0 %v572, 92
    %v619 = vpop.permute.xlu0 %618
    %v620 = vsel %vm175, %v609, %v611
    %v621 = vsel %vm175, %v611, %v613
    %v622 = vsel %vm175, %v613, %v615
    %v623 = vsel %vm175, %v615, %v617
    %v624 = vsel %vm175, %v617, %v619
    %v631 = vmax.f32 %v602, %v620
    %v632 = vmax.f32 %v603, %v621
    %v633 = vmax.f32 %v604, %v622
    %v634 = vmax.f32 %v605, %v623
    %v635 = vmax.f32 %v606, %v624
    %v636 = vmax.f32 %v607, %v619
    %v637 = vld [vmem:[%s3] sm:$0xff]
    %v638 = vld [vmem:[%s3 + $0x8] sm:$0xff]
    %v639 = vld [vmem:[%s3 + $0x10] sm:$0xff]
    %v640 = vld [vmem:[%s3 + $0x18] sm:$0xff]
    %v641 = vld [vmem:[%s3 + $0x20] sm:$0xff]
    %v642 = vld [vmem:[%s3 + $0x28] sm:$0xff]
    %v643 = vld [vmem:[%s3 + $0x30] sm:$0xff]
    %v644 = vld [vmem:[%s3 + $0x38] sm:$0xff]
    %v645 = vld [vmem:[%s3 + $0x40] sm:$0xff]
    %v646 = vld [vmem:[%s3 + $0x48] sm:$0xff]
    %v647 = vld [vmem:[%s3 + $0x50] sm:$0xff]
    %v648 = vld [vmem:[%s3 + $0x58] sm:$0xff]
    %v649 = vld [vmem:[%s3 + $0x60] sm:$0xff]
    %v650 = vld [vmem:[%s3 + $0x68] sm:$0xff]
    %v651 = vld [vmem:[%s3 + $0x70] sm:$0xff]
    %v652 = vld [vmem:[%s3 + $0x78] sm:$0xff]
    %v653 = vld [vmem:[%s3 + $0x80] sm:$0xff]
    %v654 = vld [vmem:[%s3 + $0x88] sm:$0xff]
    %v655 = vld [vmem:[%s3 + $0x90] sm:$0xff]
    %v656 = vld [vmem:[%s3 + $0x98] sm:$0xff]
    %v657 = vld [vmem:[%s3 + $0xa0] sm:$0xff]
    %v658 = vld [vmem:[%s3 + $0xa8] sm:$0xff]
    %v659 = vld [vmem:[%s3 + $0xb0] sm:$0xff]
    %v660 = vld [vmem:[%s3 + $0xb8] sm:$0xff]
    %v661 = vld [vmem:[%s3 + $0xc0] sm:$0xff]
    %v662 = vld [vmem:[%s3 + $0xc8] sm:$0xff]
    %v663 = vld [vmem:[%s3 + $0xd0] sm:$0xff]
    %v664 = vld [vmem:[%s3 + $0xd8] sm:$0xff]
    %v665 = vld [vmem:[%s3 + $0xe0] sm:$0xff]
    %v666 = vld [vmem:[%s3 + $0xe8] sm:$0xff]
    %v667 = vld [vmem:[%s3 + $0xf0] sm:$0xff]
    %v668 = vld [vmem:[%s3 + $0xf8] sm:$0xff]
    %v669 = vld [vmem:[%s3 + $0x100] sm:$0xff]
    %v670 = vld [vmem:[%s3 + $0x108] sm:$0xff]
    %v671 = vld [vmem:[%s3 + $0x110] sm:$0xff]
    %v672 = vld [vmem:[%s3 + $0x118] sm:$0xff]
    %v673 = vld [vmem:[%s3 + $0x120] sm:$0xff]
    %v674 = vld [vmem:[%s3 + $0x128] sm:$0xff]
    %v675 = vld [vmem:[%s3 + $0x130] sm:$0xff]
    %v676 = vld [vmem:[%s3 + $0x138] sm:$0xff]
    %v677 = vld [vmem:[%s3 + $0x140] sm:$0xff]
    %v678 = vld [vmem:[%s3 + $0x148] sm:$0xff]
    %v679 = vld [vmem:[%s3 + $0x150] sm:$0xff]
    %v680 = vld [vmem:[%s3 + $0x158] sm:$0xff]
    %v681 = vld [vmem:[%s3 + $0x160] sm:$0xff]
    %v682 = vld [vmem:[%s3 + $0x168] sm:$0xff]
    %v683 = vld [vmem:[%s3 + $0x170] sm:$0xff]
    %v684 = vld [vmem:[%s3 + $0x178] sm:$0xff]
    %v685 = vld [vmem:[%s3 + $0x180] sm:$0xff]
    %v686 = vld [vmem:[%s3 + $0x188] sm:$0xff]
    %v687 = vld [vmem:[%s3 + $0x190] sm:$0xff]
    %v688 = vld [vmem:[%s3 + $0x198] sm:$0xff]
    %v689 = vld [vmem:[%s3 + $0x1a0] sm:$0xff]
    %v690 = vld [vmem:[%s3 + $0x1a8] sm:$0xff]
    %v691 = vld [vmem:[%s3 + $0x1b0] sm:$0xff]
    %v692 = vld [vmem:[%s3 + $0x1b8] sm:$0xff]
    %v693 = vld [vmem:[%s3 + $0x1c0] sm:$0xff]
    %v694 = vld [vmem:[%s3 + $0x1c8] sm:$0xff]
    %v695 = vld [vmem:[%s3 + $0x1d0] sm:$0xff]
    %v696 = vld [vmem:[%s3 + $0x1d8] sm:$0xff]
    %v697 = vld [vmem:[%s3 + $0x1e0] sm:$0xff]
    %v698 = vld [vmem:[%s3 + $0x1e8] sm:$0xff]
    %v699 = vld [vmem:[%s3 + $0x1f0] sm:$0xff]
    %v700 = vld [vmem:[%s3 + $0x1f8] sm:$0xff]
    %v701 = vld [vmem:[%s3 + $0x200] sm:$0xff]
    %v702 = vld [vmem:[%s3 + $0x208] sm:$0xff]
    %v703 = vld [vmem:[%s3 + $0x210] sm:$0xff]
    %v704 = vld [vmem:[%s3 + $0x218] sm:$0xff]
    %v705 = vld [vmem:[%s3 + $0x220] sm:$0xff]
    %v706 = vld [vmem:[%s3 + $0x228] sm:$0xff]
    %v707 = vld [vmem:[%s3 + $0x230] sm:$0xff]
    %v708 = vld [vmem:[%s3 + $0x238] sm:$0xff]
    %v709 = vld [vmem:[%s3 + $0x240] sm:$0xff]
    %v710 = vld [vmem:[%s3 + $0x248] sm:$0xff]
    %v711 = vld [vmem:[%s3 + $0x250] sm:$0xff]
    %v712 = vld [vmem:[%s3 + $0x258] sm:$0xff]
    %v713 = vld [vmem:[%s3 + $0x260] sm:$0xff]
    %v714 = vld [vmem:[%s3 + $0x268] sm:$0xff]
    %v715 = vld [vmem:[%s3 + $0x270] sm:$0xff]
    %v716 = vld [vmem:[%s3 + $0x278] sm:$0xff]
    %v717 = vld [vmem:[%s3 + $0x280] sm:$0xff]
    %v718 = vld [vmem:[%s3 + $0x288] sm:$0xff]
    %v719 = vld [vmem:[%s3 + $0x290] sm:$0xff]
    %v720 = vld [vmem:[%s3 + $0x298] sm:$0xff]
    %v721 = vld [vmem:[%s3 + $0x2a0] sm:$0xff]
    %v722 = vld [vmem:[%s3 + $0x2a8] sm:$0xff]
    %v723 = vld [vmem:[%s3 + $0x2b0] sm:$0xff]
    %v724 = vld [vmem:[%s3 + $0x2b8] sm:$0xff]
    %v725 = vld [vmem:[%s3 + $0x2c0] sm:$0xff]
    %v726 = vld [vmem:[%s3 + $0x2c8] sm:$0xff]
    %v727 = vld [vmem:[%s3 + $0x2d0] sm:$0xff]
    %v728 = vld [vmem:[%s3 + $0x2d8] sm:$0xff]
    %v729 = vld [vmem:[%s3 + $0x2e0] sm:$0xff]
    %v730 = vld [vmem:[%s3 + $0x2e8] sm:$0xff]
    %v731 = vld [vmem:[%s3 + $0x2f0] sm:$0xff]
    %v732 = vld [vmem:[%s3 + $0x2f8] sm:$0xff]
    %v733 = vld [vmem:[%s3 + $0x300] sm:$0xff]
    %v734 = vld [vmem:[%s3 + $0x308] sm:$0xff]
    %v735 = vld [vmem:[%s3 + $0x310] sm:$0xff]
    %v736 = vld [vmem:[%s3 + $0x318] sm:$0xff]
    %v737 = vld [vmem:[%s3 + $0x320] sm:$0xff]
    %v738 = vld [vmem:[%s3 + $0x328] sm:$0xff]
    %v739 = vld [vmem:[%s3 + $0x330] sm:$0xff]
    %v740 = vld [vmem:[%s3 + $0x338] sm:$0xff]
    %v741 = vld [vmem:[%s3 + $0x340] sm:$0xff]
    %v742 = vld [vmem:[%s3 + $0x348] sm:$0xff]
    %v743 = vld [vmem:[%s3 + $0x350] sm:$0xff]
    %v744 = vld [vmem:[%s3 + $0x358] sm:$0xff]
    %v745 = vld [vmem:[%s3 + $0x360] sm:$0xff]
    %v746 = vld [vmem:[%s3 + $0x368] sm:$0xff]
    %v747 = vld [vmem:[%s3 + $0x370] sm:$0xff]
    %v748 = vld [vmem:[%s3 + $0x378] sm:$0xff]
    %v749 = vld [vmem:[%s3 + $0x380] sm:$0xff]
    %v750 = vld [vmem:[%s3 + $0x388] sm:$0xff]
    %v751 = vld [vmem:[%s3 + $0x390] sm:$0xff]
    %v752 = vld [vmem:[%s3 + $0x398] sm:$0xff]
    %v753 = vld [vmem:[%s3 + $0x3a0] sm:$0xff]
    %v754 = vld [vmem:[%s3 + $0x3a8] sm:$0xff]
    %v755 = vld [vmem:[%s3 + $0x3b0] sm:$0xff]
    %v756 = vld [vmem:[%s3 + $0x3b8] sm:$0xff]
    %v757 = vld [vmem:[%s3 + $0x3c0] sm:$0xff]
    %v758 = vld [vmem:[%s3 + $0x3c8] sm:$0xff]
    %v759 = vld [vmem:[%s3 + $0x3d0] sm:$0xff]
    %v760 = vld [vmem:[%s3 + $0x3d8] sm:$0xff]
    %v761 = vld [vmem:[%s3 + $0x3e0] sm:$0xff]
    %v762 = vld [vmem:[%s3 + $0x3e8] sm:$0xff]
    %v763 = vld [vmem:[%s3 + $0x3f0] sm:$0xff]
    %v764 = vld [vmem:[%s3 + $0x3f8] sm:$0xff]
    %v765 = vld [vmem:[%s3 + $0x400] sm:$0xff]
    %v766 = vld [vmem:[%s3 + $0x408] sm:$0xff]
    %v767 = vld [vmem:[%s3 + $0x410] sm:$0xff]
    %v768 = vld [vmem:[%s3 + $0x418] sm:$0xff]
    %v769 = vld [vmem:[%s3 + $0x420] sm:$0xff]
    %v770 = vld [vmem:[%s3 + $0x428] sm:$0xff]
    %v771 = vld [vmem:[%s3 + $0x430] sm:$0xff]
    %v772 = vld [vmem:[%s3 + $0x438] sm:$0xff]
    %v773 = vld [vmem:[%s3 + $0x440] sm:$0xff]
    %v774 = vld [vmem:[%s3 + $0x448] sm:$0xff]
    %v775 = vld [vmem:[%s3 + $0x450] sm:$0xff]
    %v776 = vld [vmem:[%s3 + $0x458] sm:$0xff]
    %v777 = vld [vmem:[%s3 + $0x460] sm:$0xff]
    %v778 = vld [vmem:[%s3 + $0x468] sm:$0xff]
    %v779 = vld [vmem:[%s3 + $0x470] sm:$0xff]
    %v780 = vld [vmem:[%s3 + $0x478] sm:$0xff]
    %v781 = vld [vmem:[%s3 + $0x480] sm:$0xff]
    %v782 = vld [vmem:[%s3 + $0x488] sm:$0xff]
    %v783 = vld [vmem:[%s3 + $0x490] sm:$0xff]
    %v784 = vld [vmem:[%s3 + $0x498] sm:$0xff]
    %v785 = vld [vmem:[%s3 + $0x4a0] sm:$0xff]
    %v786 = vld [vmem:[%s3 + $0x4a8] sm:$0xff]
    %v787 = vld [vmem:[%s3 + $0x4b0] sm:$0xff]
    %v788 = vld [vmem:[%s3 + $0x4b8] sm:$0xff]
    %v789 = vld [vmem:[%s3 + $0x4c0] sm:$0xff]
    %v790 = vld [vmem:[%s3 + $0x4c8] sm:$0xff]
    %v791 = vld [vmem:[%s3 + $0x4d0] sm:$0xff]
    %v792 = vld [vmem:[%s3 + $0x4d8] sm:$0xff]
    %v793 = vld [vmem:[%s3 + $0x4e0] sm:$0xff]
    %v794 = vld [vmem:[%s3 + $0x4e8] sm:$0xff]
    %v795 = vld [vmem:[%s3 + $0x4f0] sm:$0xff]
    %v796 = vld [vmem:[%s3 + $0x4f8] sm:$0xff]
    %v797 = vld [vmem:[%s3 + $0x500] sm:$0xff]
    %v798 = vld [vmem:[%s3 + $0x508] sm:$0xff]
    %vm799 = vcmask 64512
    %v801 = vsel %vm799, %v636, 0
    %803 = vmatprep.subr.mxu0 %v638
    %804 = vmatpush1.msra.mxu0 %v637
    %805 = vmatprep.subr.mxu0 %v640
    %806 = vmatpush1.msra.mxu0 %v639
    %807 = vmatprep.subr.mxu0 %v642
    %808 = vmatpush1.msra.mxu0 %v641
    %809 = vmatprep.subr.mxu0 %v644
    %810 = vmatpush1.msra.mxu0 %v643
    %811 = vmatprep.subr.mxu0 %v646
    %812 = vmatpush1.msra.mxu0 %v645
    %813 = vmatprep.subr.mxu0 %v648
    %814 = vmatpush1.msra.mxu0 %v647
    %815 = vmatprep.subr.mxu0 %v650
    %816 = vmatpush1.msra.mxu0 %v649
    %817 = vmatprep.subr.mxu0 %v652
    %818 = vmatpush1.msra.mxu0 %v651
    %819 = vmatprep.subr.mxu0 %v654
    %820 = vmatpush1.msra.mxu0 %v653
    %821 = vmatprep.subr.mxu0 %v656
    %822 = vmatpush1.msra.mxu0 %v655
    %823 = vmatprep.subr.mxu0 %v658
    %824 = vmatpush1.msra.mxu0 %v657
    %825 = vmatprep.subr.mxu0 %v660
    %826 = vmatpush1.msra.mxu0 %v659
    %827 = vmatprep.subr.mxu0 %v662
    %828 = vmatpush1.msra.mxu0 %v661
    %829 = vmatprep.subr.mxu0 %v664
    %830 = vmatpush1.msra.mxu0 %v663
    %831 = vmatprep.subr.mxu0 %v666
    %832 = vmatpush1.msra.mxu0 %v665
    %833 = vmatprep.subr.mxu0 %v668
    %834 = vmatpush1.msra.mxu0 %v667
    %835 = vmatprep.subr.mxu0 %v670
    %836 = vmatpush1.msra.mxu0 %v669
    %837 = vmatprep.subr.mxu0 %v672
    %838 = vmatpush1.msra.mxu0 %v671
    %839 = vmatprep.subr.mxu0 %v674
    %840 = vmatpush1.msra.mxu0 %v673
    %841 = vmatprep.subr.mxu0 %v676
    %842 = vmatpush1.msra.mxu0 %v675
    %843 = vmatprep.subr.mxu0 %v678
    %844 = vmatpush1.msra.mxu0 %v677
    %845 = vmatprep.subr.mxu0 %v680
    %846 = vmatpush1.msra.mxu0 %v679
    %847 = vmatprep.subr.mxu0 %v682
    %848 = vmatpush1.msra.mxu0 %v681
    %849 = vmatprep.subr.mxu0 %v684
    %850 = vmatpush1.msra.mxu0 %v683
    %851 = vmatprep.subr.mxu0 %v686
    %852 = vmatpush1.msra.mxu0 %v685
    %853 = vmatprep.subr.mxu0 %v688
    %854 = vmatpush1.msra.mxu0 %v687
    %855 = vmatprep.subr.mxu0 %v690
    %856 = vmatpush1.msra.mxu0 %v689
    %857 = vmatprep.subr.mxu0 %v692
    %858 = vmatpush1.msra.mxu0 %v691
    %859 = vmatprep.subr.mxu0 %v694
    %860 = vmatpush1.msra.mxu0 %v693
    %861 = vmatprep.subr.mxu0 %v696
    %862 = vmatpush1.msra.mxu0 %v695
    %863 = vmatprep.subr.mxu0 %v698
    %864 = vmatpush1.msra.mxu0 %v697
    %865 = vmatprep.subr.mxu0 %v700
    %866 = vmatpush1.msra.mxu0 %v699
    %867 = vmatprep.mubr.f32.mxu0 %v632
    %868 = vmatmul.mubr.f32.gmra.mrb[0].mxu0 %v631
    %v869 = vpop.f32.mrb[0].mxu0
    %v870 = vadd.f32 0.0, %v869
    %v871 = vpop.f32.mrb[0].mxu0
    %v872 = vadd.f32 0.0, %v871
    %873 = vdwg.mxu0
    %874 = vmatprep.subr.mxu0 %v702
    %875 = vmatpush1.msra.mxu0 %v701
    %876 = vmatprep.subr.mxu0 %v704
    %877 = vmatpush1.msra.mxu0 %v703
    %878 = vmatprep.subr.mxu0 %v706
    %879 = vmatpush1.msra.mxu0 %v705
    %880 = vmatprep.subr.mxu0 %v708
    %881 = vmatpush1.msra.mxu0 %v707
    %882 = vmatprep.subr.mxu0 %v710
    %883 = vmatpush1.msra.mxu0 %v709
    %884 = vmatprep.subr.mxu0 %v712
    %885 = vmatpush1.msra.mxu0 %v711
    %886 = vmatprep.subr.mxu0 %v714
    %887 = vmatpush1.msra.mxu0 %v713
    %888 = vmatprep.subr.mxu0 %v716
    %889 = vmatpush1.msra.mxu0 %v715
    %890 = vmatprep.subr.mxu0 %v718
    %891 = vmatpush1.msra.mxu0 %v717
    %892 = vmatprep.subr.mxu0 %v720
    %893 = vmatpush1.msra.mxu0 %v719
    %894 = vmatprep.subr.mxu0 %v722
    %895 = vmatpush1.msra.mxu0 %v721
    %896 = vmatprep.subr.mxu0 %v724
    %897 = vmatpush1.msra.mxu0 %v723
    %898 = vmatprep.subr.mxu0 %v726
    %899 = vmatpush1.msra.mxu0 %v725
    %900 = vmatprep.subr.mxu0 %v728
    %901 = vmatpush1.msra.mxu0 %v727
    %902 = vmatprep.subr.mxu0 %v730
    %903 = vmatpush1.msra.mxu0 %v729
    %904 = vmatprep.subr.mxu0 %v732
    %905 = vmatpush1.msra.mxu0 %v731
    %906 = vmatprep.subr.mxu0 %v734
    %907 = vmatpush1.msra.mxu0 %v733
    %908 = vmatprep.subr.mxu0 %v736
    %909 = vmatpush1.msra.mxu0 %v735
    %910 = vmatprep.subr.mxu0 %v738
    %911 = vmatpush1.msra.mxu0 %v737
    %912 = vmatprep.subr.mxu0 %v740
    %913 = vmatpush1.msra.mxu0 %v739
    %914 = vmatprep.subr.mxu0 %v742
    %915 = vmatpush1.msra.mxu0 %v741
    %916 = vmatprep.subr.mxu0 %v744
    %917 = vmatpush1.msra.mxu0 %v743
    %918 = vmatprep.subr.mxu0 %v746
    %919 = vmatpush1.msra.mxu0 %v745
    %920 = vmatprep.subr.mxu0 %v748
    %921 = vmatpush1.msra.mxu0 %v747
    %922 = vmatprep.subr.mxu0 %v750
    %923 = vmatpush1.msra.mxu0 %v749
    %924 = vmatprep.subr.mxu0 %v752
    %925 = vmatpush1.msra.mxu0 %v751
    %926 = vmatprep.subr.mxu0 %v754
    %927 = vmatpush1.msra.mxu0 %v753
    %928 = vmatprep.subr.mxu0 %v756
    %929 = vmatpush1.msra.mxu0 %v755
    %930 = vmatprep.subr.mxu0 %v758
    %931 = vmatpush1.msra.mxu0 %v757
    %932 = vmatprep.subr.mxu0 %v760
    %933 = vmatpush1.msra.mxu0 %v759
    %934 = vmatprep.subr.mxu0 %v762
    %935 = vmatpush1.msra.mxu0 %v761
    %936 = vmatprep.subr.mxu0 %v764
    %937 = vmatpush1.msra.mxu0 %v763
    %938 = vmatprep.mubr.f32.mxu0 %v634
    %939 = vmatmul.mubr.f32.gmra.mrb[0].mxu0 %v633
    %v940 = vpop.f32.mrb[0].mxu0
    %v941 = vadd.f32 %v870, %v940
    %v942 = vpop.f32.mrb[0].mxu0
    %v943 = vadd.f32 %v872, %v942
    %944 = vdwg.mxu0
    %945 = vmatprep.subr.mxu0 %v766
    %946 = vmatpush1.msra.mxu0 %v765
    %947 = vmatprep.subr.mxu0 %v768
    %948 = vmatpush1.msra.mxu0 %v767
    %949 = vmatprep.subr.mxu0 %v770
    %950 = vmatpush1.msra.mxu0 %v769
    %951 = vmatprep.subr.mxu0 %v772
    %952 = vmatpush1.msra.mxu0 %v771
    %953 = vmatprep.subr.mxu0 %v774
    %954 = vmatpush1.msra.mxu0 %v773
    %955 = vmatprep.subr.mxu0 %v776
    %956 = vmatpush1.msra.mxu0 %v775
    %957 = vmatprep.subr.mxu0 %v778
    %958 = vmatpush1.msra.mxu0 %v777
    %959 = vmatprep.subr.mxu0 %v780
    %960 = vmatpush1.msra.mxu0 %v779
    %961 = vmatprep.subr.mxu0 %v782
    %962 = vmatpush1.msra.mxu0 %v781
    %963 = vmatprep.subr.mxu0 %v784
    %964 = vmatpush1.msra.mxu0 %v783
    %965 = vmatprep.subr.mxu0 %v786
    %966 = vmatpush1.msra.mxu0 %v785
    %967 = vmatprep.subr.mxu0 %v788
    %968 = vmatpush1.msra.mxu0 %v787
    %969 = vmatprep.subr.mxu0 %v790
    %970 = vmatpush1.msra.mxu0 %v789
    %971 = vmatprep.subr.mxu0 %v792
    %972 = vmatpush1.msra.mxu0 %v791
    %973 = vmatprep.subr.mxu0 %v794
    %974 = vmatpush1.msra.mxu0 %v793
    %975 = vmatprep.subr.mxu0 %v796
    %976 = vmatpush1.msra.mxu0 %v795
    %977 = vmatprep.subr.mxu0 %v798
    %978 = vmatpush1.msra.mxu0 %v797
    %979 = vmatprep.subr.mxu0 0.0
    %980 = vmatpush1.msra.mxu0 0.0
    %981 = vmatprep.subr.mxu0 0.0
    %982 = vmatpush1.msra.mxu0 0.0
    %983 = vmatprep.subr.mxu0 0.0
    %984 = vmatpush1.msra.mxu0 0.0
    %985 = vmatprep.subr.mxu0 0.0
    %986 = vmatpush1.msra.mxu0 0.0
    %987 = vmatprep.subr.mxu0 0.0
    %988 = vmatpush1.msra.mxu0 0.0
    %989 = vmatprep.subr.mxu0 0.0
    %990 = vmatpush1.msra.mxu0 0.0
    %991 = vmatprep.subr.mxu0 0.0
    %992 = vmatpush1.msra.mxu0 0.0
    %993 = vmatprep.subr.mxu0 0.0
    %994 = vmatpush1.msra.mxu0 0.0
    %995 = vmatprep.subr.mxu0 0.0
    %996 = vmatpush1.msra.mxu0 0.0
    %997 = vmatprep.subr.mxu0 0.0
    %998 = vmatpush1.msra.mxu0 0.0
    %999 = vmatprep.subr.mxu0 0.0
    %1000 = vmatpush1.msra.mxu0 0.0
    %1001 = vmatprep.subr.mxu0 0.0
    %1002 = vmatpush1.msra.mxu0 0.0
    %1003 = vmatprep.subr.mxu0 0.0
    %1004 = vmatpush1.msra.mxu0 0.0
    %1005 = vmatprep.subr.mxu0 0.0
    %1006 = vmatpush1.msra.mxu0 0.0
    %1007 = vmatprep.subr.mxu0 0.0
    %1008 = vmatpush1.msra.mxu0 0.0
    %1009 = vmatprep.mubr.f32.mxu0 %v801
    %1010 = vmatmul.mubr.f32.gmra.mrb[0].mxu0 %v635
    %v1011 = vpop.f32.mrb[0].mxu0
    %v1012 = vadd.f32 %v941, %v1011
    %v1013 = vpop.f32.mrb[0].mxu0
    %v1014 = vadd.f32 %v943, %v1013
    %1015 = vdwg.mxu0
    %1018 = vrot.lane.b32.xlu0 %v1012, 11
    %v1019 = vpop.permute.xlu0 %1018
    %1020 = vrot.lane.b32.xlu0 %v1014, 11
    %v1021 = vpop.permute.xlu0 %1020
    %vm1022 = vcmask 89088
    %v1023 = vsel %vm1022, %v1019, %v1021
    %vm1026 = vcmask 1047640
    %1027 = vst.msk [vmem:[#allocation3] sm:$0xff] %vm1026, %v1019
    %vm1028 = vcmask 678912
    %1029 = vst.msk [vmem:[#allocation3 + $0x8] sm:$0xff] %vm1028, %v1023
    %v1030 = vld [vmem:[#allocation3] sm:$0xff]
    %v1031 = vld [vmem:[#allocation3 + $0x8] sm:$0xff]
    %v1032 = vmax.f32 %v1030, 0.0
    %v1033 = vmax.f32 %v1031, 0.0
    %1034 = vst.msk [vmem:[#allocation4] sm:$0xff] %vm1026, %v1032
    %1035 = vst.msk [vmem:[#allocation4 + $0x8] sm:$0xff] %vm1028, %v1033
    %v1036 = vld [vmem:[#allocation4] sm:$0xff]
    %v1037 = vld [vmem:[#allocation4 + $0x8] sm:$0xff]
    %1040 = vrot.lane.b32.xlu0 %v1036, 127
    %v1041 = vpop.permute.xlu0 %1040
    %1042 = vrot.lane.b32.xlu0 %v1037, 127
    %v1043 = vpop.permute.xlu0 %1042
    %v1044 = vsel %vm55, %v1041, %v1043
    %1047 = vrot.lane.b32.xlu0 %v1036, 126
    %v1048 = vpop.permute.xlu0 %1047
    %1049 = vrot.lane.b32.xlu0 %v1037, 126
    %v1050 = vpop.permute.xlu0 %1049
    %v1051 = vsel %vm79, %v1048, %v1050
    %1054 = vrot.lane.b32.xlu0 %v1036, 118
    %v1055 = vpop.permute.xlu0 %1054
    %1056 = vrot.lane.b32.xlu0 %v1037, 118
    %v1057 = vpop.permute.xlu0 %1056
    %vm1058 = vcmask 965632
    %v1059 = vsel %vm1058, %v1055, %v1057
    %1062 = vrot.lane.b32.xlu0 %v1036, 117
    %v1063 = vpop.permute.xlu0 %1062
    %1064 = vrot.lane.b32.xlu0 %v1037, 117
    %v1065 = vpop.permute.xlu0 %1064
    %vm1066 = vcmask 957440
    %v1067 = vsel %vm1066, %v1063, %v1065
    %1070 = vrot.lane.b32.xlu0 %v1036, 116
    %v1071 = vpop.permute.xlu0 %1070
    %1072 = vrot.lane.b32.xlu0 %v1037, 116
    %v1073 = vpop.permute.xlu0 %1072
    %vm1074 = vcmask 949248
    %v1075 = vsel %vm1074, %v1071, %v1073
    %1078 = vrot.lane.b32.xlu0 %v1036, 108
    %v1079 = vpop.permute.xlu0 %1078
    %1080 = vrot.lane.b32.xlu0 %v1037, 108
    %v1081 = vpop.permute.xlu0 %1080
    %v1082 = vsel %vm151, %v1079, %v1081
    %1085 = vrot.lane.b32.xlu0 %v1036, 107
    %v1086 = vpop.permute.xlu0 %1085
    %1087 = vrot.lane.b32.xlu0 %v1037, 107
    %v1088 = vpop.permute.xlu0 %1087
    %vm1089 = vcmask 875520
    %v1090 = vsel %vm1089, %v1086, %v1088
    %1093 = vrot.lane.b32.xlu0 %v1036, 106
    %v1094 = vpop.permute.xlu0 %1093
    %1095 = vrot.lane.b32.xlu0 %v1037, 106
    %v1096 = vpop.permute.xlu0 %1095
    %vm1097 = vcmask 867328
    %v1098 = vsel %vm1097, %v1094, %v1096
    %s1101 = scalar_lea.vmem %s1, 8
    %v1102 = vld [vmem:[%s1101] sm:$0xff]
    %s1103 = scalar_lea.vmem %s2, 8
    %v1104 = vld [vmem:[%s1103] sm:$0xff]
    %1106 = vset.pattern.permute.xlu0 0
    %1107 = vperm.xlu0 %1106, %v1104
    %v1108 = vpop.permute.xlu0 %1107
    %v1111 = vsel %vm242, %v1102, 0
    %1113 = vmatprep.subr.mxu0 %v1037
    %1114 = vmatpush1.msra.mxu0 %v1036
    %1115 = vmatprep.subr.mxu0 %v1043
    %1116 = vmatpush1.msra.mxu0 %v1044
    %1117 = vmatprep.subr.mxu0 %v1050
    %1118 = vmatpush1.msra.mxu0 %v1051
    %1119 = vmatprep.subr.mxu0 %v1057
    %1120 = vmatpush1.msra.mxu0 %v1059
    %1121 = vmatprep.subr.mxu0 %v1065
    %1122 = vmatpush1.msra.mxu0 %v1067
    %1123 = vmatprep.subr.mxu0 %v1073
    %1124 = vmatpush1.msra.mxu0 %v1075
    %1125 = vmatprep.subr.mxu0 %v1081
    %1126 = vmatpush1.msra.mxu0 %v1082
    %1127 = vmatprep.subr.mxu0 %v1088
    %1128 = vmatpush1.msra.mxu0 %v1090
    %1129 = vmatprep.subr.mxu0 %v1096
    %1130 = vmatpush1.msra.mxu0 %v1098
    %1131 = vmatprep.subr.mxu0 0.0
    %1132 = vmatpush1.msra.mxu0 0.0
    %1133 = vmatprep.subr.mxu0 0.0
    %1134 = vmatpush1.msra.mxu0 0.0
    %1135 = vmatprep.subr.mxu0 0.0
    %1136 = vmatpush1.msra.mxu0 0.0
    %1137 = vmatprep.subr.mxu0 0.0
    %1138 = vmatpush1.msra.mxu0 0.0
    %1139 = vmatprep.subr.mxu0 0.0
    %1140 = vmatpush1.msra.mxu0 0.0
    %1141 = vmatprep.subr.mxu0 0.0
    %1142 = vmatpush1.msra.mxu0 0.0
    %1143 = vmatprep.subr.mxu0 0.0
    %1144 = vmatpush1.msra.mxu0 0.0
    %1145 = vmatprep.subr.mxu0 0.0
    %1146 = vmatpush1.msra.mxu0 0.0
    %1147 = vmatprep.subr.mxu0 0.0
    %1148 = vmatpush1.msra.mxu0 0.0
    %1149 = vmatprep.subr.mxu0 0.0
    %1150 = vmatpush1.msra.mxu0 0.0
    %1151 = vmatprep.subr.mxu0 0.0
    %1152 = vmatpush1.msra.mxu0 0.0
    %1153 = vmatprep.subr.mxu0 0.0
    %1154 = vmatpush1.msra.mxu0 0.0
    %1155 = vmatprep.subr.mxu0 0.0
    %1156 = vmatpush1.msra.mxu0 0.0
    %1157 = vmatprep.subr.mxu0 0.0
    %1158 = vmatpush1.msra.mxu0 0.0
    %1159 = vmatprep.subr.mxu0 0.0
    %1160 = vmatpush1.msra.mxu0 0.0
    %1161 = vmatprep.subr.mxu0 0.0
    %1162 = vmatpush1.msra.mxu0 0.0
    %1163 = vmatprep.subr.mxu0 0.0
    %1164 = vmatpush1.msra.mxu0 0.0
    %1165 = vmatprep.subr.mxu0 0.0
    %1166 = vmatpush1.msra.mxu0 0.0
    %1167 = vmatprep.subr.mxu0 0.0
    %1168 = vmatpush1.msra.mxu0 0.0
    %1169 = vmatprep.subr.mxu0 0.0
    %1170 = vmatpush1.msra.mxu0 0.0
    %1171 = vmatprep.subr.mxu0 0.0
    %1172 = vmatpush1.msra.mxu0 0.0
    %1173 = vmatprep.subr.mxu0 0.0
    %1174 = vmatpush1.msra.mxu0 0.0
    %1175 = vmatprep.subr.mxu0 0.0
    %1176 = vmatpush1.msra.mxu0 0.0
    %1177 = vmatprep.mubr.f32.mxu0 0.0
    %1178 = vmatmul.mubr.f32.gmra.mrb[0].mxu0 %v1111
    %v1179 = vpop.f32.mrb[0].mxu0
    %v1180 = vadd.f32 %v1108, %v1179
    %v1181 = vpop.f32.mrb[0].mxu0
    %v1182 = vadd.f32 %v1108, %v1181
    %1183 = vdwg.mxu0
    %v1184 = vmax.f32 %v1180, 0.0
    %v1185 = vmax.f32 %v1182, 0.0
    %v1186 = vsel %vm30, 1, 0
    %v1187 = vlaneseq
    %v1188 = vshrl.u32 %v1187, 7
    %v1189 = vsub.s32 0, %v1188
    %v1190 = vrot.slane %v1186, %v1189
    %v1191 = vlaneseq
    %v1192 = vshrl.u32 %v1191, 7
    %v1193 = vsub.s32 1, %v1192
    %v1194 = vrot.slane %v1186, %v1193
    %vm1195 = vcmp.eq.s32.totalorder %v1190, 1
    %vm1196 = vcmp.eq.s32.totalorder %v1194, 1
    %v1197 = vsel %vm1195, %v1184, 0.0
    %v1198 = vsel %vm1196, %v1185, 0.0
    %1201 = vrot.lane.b32.xlu0 %v1197, 11
    %v1202 = vpop.permute.xlu0 %1201
    %1203 = vrot.lane.b32.xlu0 %v1198, 11
    %v1204 = vpop.permute.xlu0 %1203
    %v1205 = vsel %vm1022, %v1202, %v1204
    %1208 = vst.msk [vmem:[#allocation4] sm:$0xff] %vm1026, %v1202
    %1209 = vst.msk [vmem:[#allocation4 + $0x8] sm:$0xff] %vm1028, %v1205
    %v1210 = vld [vmem:[#allocation4] sm:$0xff]
    %v1211 = vld [vmem:[#allocation4 + $0x8] sm:$0xff]
    %1214 = vrot.lane.b32.xlu0 %v1210, 127
    %v1215 = vpop.permute.xlu0 %1214
    %1216 = vrot.lane.b32.xlu0 %v1211, 127
    %v1217 = vpop.permute.xlu0 %1216
    %v1218 = vsel %vm55, %v1215, %v1217
    %1221 = vrot.lane.b32.xlu0 %v1210, 126
    %v1222 = vpop.permute.xlu0 %1221
    %1223 = vrot.lane.b32.xlu0 %v1211, 126
    %v1224 = vpop.permute.xlu0 %1223
    %v1225 = vsel %vm79, %v1222, %v1224
    %1228 = vrot.lane.b32.xlu0 %v1210, 118
    %v1229 = vpop.permute.xlu0 %1228
    %1230 = vrot.lane.b32.xlu0 %v1211, 118
    %v1231 = vpop.permute.xlu0 %1230
    %v1232 = vsel %vm1058, %v1229, %v1231
    %1235 = vrot.lane.b32.xlu0 %v1210, 117
    %v1236 = vpop.permute.xlu0 %1235
    %1237 = vrot.lane.b32.xlu0 %v1211, 117
    %v1238 = vpop.permute.xlu0 %1237
    %v1239 = vsel %vm1066, %v1236, %v1238
    %1242 = vrot.lane.b32.xlu0 %v1210, 116
    %v1243 = vpop.permute.xlu0 %1242
    %1244 = vrot.lane.b32.xlu0 %v1211, 116
    %v1245 = vpop.permute.xlu0 %1244
    %v1246 = vsel %vm1074, %v1243, %v1245
    %1249 = vrot.lane.b32.xlu0 %v1210, 108
    %v1250 = vpop.permute.xlu0 %1249
    %1251 = vrot.lane.b32.xlu0 %v1211, 108
    %v1252 = vpop.permute.xlu0 %1251
    %v1253 = vsel %vm151, %v1250, %v1252
    %1256 = vrot.lane.b32.xlu0 %v1210, 107
    %v1257 = vpop.permute.xlu0 %1256
    %1258 = vrot.lane.b32.xlu0 %v1211, 107
    %v1259 = vpop.permute.xlu0 %1258
    %v1260 = vsel %vm1089, %v1257, %v1259
    %1263 = vrot.lane.b32.xlu0 %v1210, 106
    %v1264 = vpop.permute.xlu0 %1263
    %1265 = vrot.lane.b32.xlu0 %v1211, 106
    %v1266 = vpop.permute.xlu0 %1265
    %v1267 = vsel %vm1097, %v1264, %v1266
    %s1270 = scalar_lea.vmem %s1, 16
    %v1271 = vld [vmem:[%s1270] sm:$0xff]
    %s1272 = scalar_lea.vmem %s2, 16
    %v1273 = vld [vmem:[%s1272] sm:$0xff]
    %1275 = vset.pattern.permute.xlu0 0
    %1276 = vperm.xlu0 %1275, %v1273
    %v1277 = vpop.permute.xlu0 %1276
    %v1280 = vsel %vm242, %v1271, 0
    %1282 = vmatprep.subr.mxu0 %v1211
    %1283 = vmatpush1.msra.mxu0 %v1210
    %1284 = vmatprep.subr.mxu0 %v1217
    %1285 = vmatpush1.msra.mxu0 %v1218
    %1286 = vmatprep.subr.mxu0 %v1224
    %1287 = vmatpush1.msra.mxu0 %v1225
    %1288 = vmatprep.subr.mxu0 %v1231
    %1289 = vmatpush1.msra.mxu0 %v1232
    %1290 = vmatprep.subr.mxu0 %v1238
    %1291 = vmatpush1.msra.mxu0 %v1239
    %1292 = vmatprep.subr.mxu0 %v1245
    %1293 = vmatpush1.msra.mxu0 %v1246
    %1294 = vmatprep.subr.mxu0 %v1252
    %1295 = vmatpush1.msra.mxu0 %v1253
    %1296 = vmatprep.subr.mxu0 %v1259
    %1297 = vmatpush1.msra.mxu0 %v1260
    %1298 = vmatprep.subr.mxu0 %v1266
    %1299 = vmatpush1.msra.mxu0 %v1267
    %1300 = vmatprep.subr.mxu0 0.0
    %1301 = vmatpush1.msra.mxu0 0.0
    %1302 = vmatprep.subr.mxu0 0.0
    %1303 = vmatpush1.msra.mxu0 0.0
    %1304 = vmatprep.subr.mxu0 0.0
    %1305 = vmatpush1.msra.mxu0 0.0
    %1306 = vmatprep.subr.mxu0 0.0
    %1307 = vmatpush1.msra.mxu0 0.0
    %1308 = vmatprep.subr.mxu0 0.0
    %1309 = vmatpush1.msra.mxu0 0.0
    %1310 = vmatprep.subr.mxu0 0.0
    %1311 = vmatpush1.msra.mxu0 0.0
    %1312 = vmatprep.subr.mxu0 0.0
    %1313 = vmatpush1.msra.mxu0 0.0
    %1314 = vmatprep.subr.mxu0 0.0
    %1315 = vmatpush1.msra.mxu0 0.0
    %1316 = vmatprep.subr.mxu0 0.0
    %1317 = vmatpush1.msra.mxu0 0.0
    %1318 = vmatprep.subr.mxu0 0.0
    %1319 = vmatpush1.msra.mxu0 0.0
    %1320 = vmatprep.subr.mxu0 0.0
    %1321 = vmatpush1.msra.mxu0 0.0
    %1322 = vmatprep.subr.mxu0 0.0
    %1323 = vmatpush1.msra.mxu0 0.0
    %1324 = vmatprep.subr.mxu0 0.0
    %1325 = vmatpush1.msra.mxu0 0.0
    %1326 = vmatprep.subr.mxu0 0.0
    %1327 = vmatpush1.msra.mxu0 0.0
    %1328 = vmatprep.subr.mxu0 0.0
    %1329 = vmatpush1.msra.mxu0 0.0
    %1330 = vmatprep.subr.mxu0 0.0
    %1331 = vmatpush1.msra.mxu0 0.0
    %1332 = vmatprep.subr.mxu0 0.0
    %1333 = vmatpush1.msra.mxu0 0.0
    %1334 = vmatprep.subr.mxu0 0.0
    %1335 = vmatpush1.msra.mxu0 0.0
    %1336 = vmatprep.subr.mxu0 0.0
    %1337 = vmatpush1.msra.mxu0 0.0
    %1338 = vmatprep.subr.mxu0 0.0
    %1339 = vmatpush1.msra.mxu0 0.0
    %1340 = vmatprep.subr.mxu0 0.0
    %1341 = vmatpush1.msra.mxu0 0.0
    %1342 = vmatprep.subr.mxu0 0.0
    %1343 = vmatpush1.msra.mxu0 0.0
    %1344 = vmatprep.subr.mxu0 0.0
    %1345 = vmatpush1.msra.mxu0 0.0
    %1346 = vmatprep.mubr.f32.mxu0 0.0
    %1347 = vmatmul.mubr.f32.gmra.mrb[0].mxu0 %v1280
    %v1348 = vpop.f32.mrb[0].mxu0
    %v1349 = vadd.f32 %v1277, %v1348
    %v1350 = vpop.f32.mrb[0].mxu0
    %v1351 = vadd.f32 %v1277, %v1350
    %1352 = vdwg.mxu0
    %1355 = vrot.lane.b32.xlu0 %v1030, 117
    %v1356 = vpop.permute.xlu0 %1355
    %1357 = vrot.lane.b32.xlu0 %v1031, 117
    %v1358 = vpop.permute.xlu0 %1357
    %v1359 = vsel %vm1066, %v1356, %v1358
    %v1362 = vadd.f32 %v1349, %v1359
    %v1363 = vadd.f32 %v1351, %v1358
    %v1364 = vsel %vm1195, %v1362, 0.0
    %v1365 = vsel %vm1196, %v1363, 0.0
    %1368 = vrot.lane.b32.xlu0 %v1364, 11
    %v1369 = vpop.permute.xlu0 %1368
    %1370 = vrot.lane.b32.xlu0 %v1365, 11
    %v1371 = vpop.permute.xlu0 %1370
    %v1372 = vsel %vm1022, %v1369, %v1371
    %1375 = vst.msk [vmem:[#allocation3] sm:$0xff] %vm1026, %v1369
    %1376 = vst.msk [vmem:[#allocation3 + $0x8] sm:$0xff] %vm1028, %v1372
    %v1377 = vld [vmem:[#allocation3] sm:$0xff]
    %v1378 = vld [vmem:[#allocation3 + $0x8] sm:$0xff]
    %v1379 = vmax.f32 %v1377, 0.0
    %v1380 = vmax.f32 %v1378, 0.0
    %1381 = vst.msk [vmem:[#allocation4] sm:$0xff] %vm1026, %v1379
    %1382 = vst.msk [vmem:[#allocation4 + $0x8] sm:$0xff] %vm1028, %v1380
    %v1383 = vld [vmem:[#allocation4] sm:$0xff]
    %v1384 = vld [vmem:[#allocation4 + $0x8] sm:$0xff]
    %1387 = vrot.lane.b32.xlu0 %v1383, 127
    %v1388 = vpop.permute.xlu0 %1387
    %1389 = vrot.lane.b32.xlu0 %v1384, 127
    %v1390 = vpop.permute.xlu0 %1389
    %v1391 = vsel %vm55, %v1388, %v1390
    %1394 = vrot.lane.b32.xlu0 %v1383, 126
    %v1395 = vpop.permute.xlu0 %1394
    %1396 = vrot.lane.b32.xlu0 %v1384, 126
    %v1397 = vpop.permute.xlu0 %1396
    %v1398 = vsel %vm79, %v1395, %v1397
    %1401 = vrot.lane.b32.xlu0 %v1383, 118
    %v1402 = vpop.permute.xlu0 %1401
    %1403 = vrot.lane.b32.xlu0 %v1384, 118
    %v1404 = vpop.permute.xlu0 %1403
    %v1405 = vsel %vm1058, %v1402, %v1404
    %1408 = vrot.lane.b32.xlu0 %v1383, 117
    %v1409 = vpop.permute.xlu0 %1408
    %1410 = vrot.lane.b32.xlu0 %v1384, 117
    %v1411 = vpop.permute.xlu0 %1410
    %v1412 = vsel %vm1066, %v1409, %v1411
    %1415 = vrot.lane.b32.xlu0 %v1383, 116
    %v1416 = vpop.permute.xlu0 %1415
    %1417 = vrot.lane.b32.xlu0 %v1384, 116
    %v1418 = vpop.permute.xlu0 %1417
    %v1419 = vsel %vm1074, %v1416, %v1418
    %1422 = vrot.lane.b32.xlu0 %v1383, 108
    %v1423 = vpop.permute.xlu0 %1422
    %1424 = vrot.lane.b32.xlu0 %v1384, 108
    %v1425 = vpop.permute.xlu0 %1424
    %v1426 = vsel %vm151, %v1423, %v1425
    %1429 = vrot.lane.b32.xlu0 %v1383, 107
    %v1430 = vpop.permute.xlu0 %1429
    %1431 = vrot.lane.b32.xlu0 %v1384, 107
    %v1432 = vpop.permute.xlu0 %1431
    %v1433 = vsel %vm1089, %v1430, %v1432
    %1436 = vrot.lane.b32.xlu0 %v1383, 106
    %v1437 = vpop.permute.xlu0 %1436
    %1438 = vrot.lane.b32.xlu0 %v1384, 106
    %v1439 = vpop.permute.xlu0 %1438
    %v1440 = vsel %vm1097, %v1437, %v1439
    %s1443 = scalar_lea.vmem %s1, 24
    %v1444 = vld [vmem:[%s1443] sm:$0xff]
    %s1445 = scalar_lea.vmem %s2, 24
    %v1446 = vld [vmem:[%s1445] sm:$0xff]
    %1448 = vset.pattern.permute.xlu0 0
    %1449 = vperm.xlu0 %1448, %v1446
    %v1450 = vpop.permute.xlu0 %1449
    %v1453 = vsel %vm242, %v1444, 0
    %1455 = vmatprep.subr.mxu0 %v1384
    %1456 = vmatpush1.msra.mxu0 %v1383
    %1457 = vmatprep.subr.mxu0 %v1390
    %1458 = vmatpush1.msra.mxu0 %v1391
    %1459 = vmatprep.subr.mxu0 %v1397
    %1460 = vmatpush1.msra.mxu0 %v1398
    %1461 = vmatprep.subr.mxu0 %v1404
    %1462 = vmatpush1.msra.mxu0 %v1405
    %1463 = vmatprep.subr.mxu0 %v1411
    %1464 = vmatpush1.msra.mxu0 %v1412
    %1465 = vmatprep.subr.mxu0 %v1418
    %1466 = vmatpush1.msra.mxu0 %v1419
    %1467 = vmatprep.subr.mxu0 %v1425
    %1468 = vmatpush1.msra.mxu0 %v1426
    %1469 = vmatprep.subr.mxu0 %v1432
    %1470 = vmatpush1.msra.mxu0 %v1433
    %1471 = vmatprep.subr.mxu0 %v1439
    %1472 = vmatpush1.msra.mxu0 %v1440
    %1473 = vmatprep.subr.mxu0 0.0
    %1474 = vmatpush1.msra.mxu0 0.0
    %1475 = vmatprep.subr.mxu0 0.0
    %1476 = vmatpush1.msra.mxu0 0.0
    %1477 = vmatprep.subr.mxu0 0.0
    %1478 = vmatpush1.msra.mxu0 0.0
    %1479 = vmatprep.subr.mxu0 0.0
    %1480 = vmatpush1.msra.mxu0 0.0
    %1481 = vmatprep.subr.mxu0 0.0
    %1482 = vmatpush1.msra.mxu0 0.0
    %1483 = vmatprep.subr.mxu0 0.0
    %1484 = vmatpush1.msra.mxu0 0.0
    %1485 = vmatprep.subr.mxu0 0.0
    %1486 = vmatpush1.msra.mxu0 0.0
    %1487 = vmatprep.subr.mxu0 0.0
    %1488 = vmatpush1.msra.mxu0 0.0
    %1489 = vmatprep.subr.mxu0 0.0
    %1490 = vmatpush1.msra.mxu0 0.0
    %1491 = vmatprep.subr.mxu0 0.0
    %1492 = vmatpush1.msra.mxu0 0.0
    %1493 = vmatprep.subr.mxu0 0.0
    %1494 = vmatpush1.msra.mxu0 0.0
    %1495 = vmatprep.subr.mxu0 0.0
    %1496 = vmatpush1.msra.mxu0 0.0
    %1497 = vmatprep.subr.mxu0 0.0
    %1498 = vmatpush1.msra.mxu0 0.0
    %1499 = vmatprep.subr.mxu0 0.0
    %1500 = vmatpush1.msra.mxu0 0.0
    %1501 = vmatprep.subr.mxu0 0.0
    %1502 = vmatpush1.msra.mxu0 0.0
    %1503 = vmatprep.subr.mxu0 0.0
    %1504 = vmatpush1.msra.mxu0 0.0
    %1505 = vmatprep.subr.mxu0 0.0
    %1506 = vmatpush1.msra.mxu0 0.0
    %1507 = vmatprep.subr.mxu0 0.0
    %1508 = vmatpush1.msra.mxu0 0.0
    %1509 = vmatprep.subr.mxu0 0.0
    %1510 = vmatpush1.msra.mxu0 0.0
    %1511 = vmatprep.subr.mxu0 0.0
    %1512 = vmatpush1.msra.mxu0 0.0
    %1513 = vmatprep.subr.mxu0 0.0
    %1514 = vmatpush1.msra.mxu0 0.0
    %1515 = vmatprep.subr.mxu0 0.0
    %1516 = vmatpush1.msra.mxu0 0.0
    %1517 = vmatprep.subr.mxu0 0.0
    %1518 = vmatpush1.msra.mxu0 0.0
    %1519 = vmatprep.mubr.f32.mxu0 0.0
    %1520 = vmatmul.mubr.f32.gmra.mrb[0].mxu0 %v1453
    %v1521 = vpop.f32.mrb[0].mxu0
    %v1522 = vadd.f32 %v1450, %v1521
    %v1523 = vpop.f32.mrb[0].mxu0
    %v1524 = vadd.f32 %v1450, %v1523
    %1525 = vdwg.mxu0
    %v1526 = vmax.f32 %v1522, 0.0
    %v1527 = vmax.f32 %v1524, 0.0
    %v1528 = vsel %vm1195, %v1526, 0.0
    %v1529 = vsel %vm1196, %v1527, 0.0
    %1532 = vrot.lane.b32.xlu0 %v1528, 11
    %v1533 = vpop.permute.xlu0 %1532
    %1534 = vrot.lane.b32.xlu0 %v1529, 11
    %v1535 = vpop.permute.xlu0 %1534
    %v1536 = vsel %vm1022, %v1533, %v1535
    %1539 = vst.msk [vmem:[#allocation4] sm:$0xff] %vm1026, %v1533
    %1540 = vst.msk [vmem:[#allocation4 + $0x8] sm:$0xff] %vm1028, %v1536
    %v1541 = vld [vmem:[#allocation4] sm:$0xff]
    %v1542 = vld [vmem:[#allocation4 + $0x8] sm:$0xff]
    %1545 = vrot.lane.b32.xlu0 %v1541, 127
    %v1546 = vpop.permute.xlu0 %1545
    %1547 = vrot.lane.b32.xlu0 %v1542, 127
    %v1548 = vpop.permute.xlu0 %1547
    %v1549 = vsel %vm55, %v1546, %v1548
    %1552 = vrot.lane.b32.xlu0 %v1541, 126
    %v1553 = vpop.permute.xlu0 %1552
    %1554 = vrot.lane.b32.xlu0 %v1542, 126
    %v1555 = vpop.permute.xlu0 %1554
    %v1556 = vsel %vm79, %v1553, %v1555
    %1559 = vrot.lane.b32.xlu0 %v1541, 118
    %v1560 = vpop.permute.xlu0 %1559
    %1561 = vrot.lane.b32.xlu0 %v1542, 118
    %v1562 = vpop.permute.xlu0 %1561
    %v1563 = vsel %vm1058, %v1560, %v1562
    %1566 = vrot.lane.b32.xlu0 %v1541, 117
    %v1567 = vpop.permute.xlu0 %1566
    %1568 = vrot.lane.b32.xlu0 %v1542, 117
    %v1569 = vpop.permute.xlu0 %1568
    %v1570 = vsel %vm1066, %v1567, %v1569
    %1573 = vrot.lane.b32.xlu0 %v1541, 116
    %v1574 = vpop.permute.xlu0 %1573
    %1575 = vrot.lane.b32.xlu0 %v1542, 116
    %v1576 = vpop.permute.xlu0 %1575
    %v1577 = vsel %vm1074, %v1574, %v1576
    %1580 = vrot.lane.b32.xlu0 %v1541, 108
    %v1581 = vpop.permute.xlu0 %1580
    %1582 = vrot.lane.b32.xlu0 %v1542, 108
    %v1583 = vpop.permute.xlu0 %1582
    %v1584 = vsel %vm151, %v1581, %v1583
    %1587 = vrot.lane.b32.xlu0 %v1541, 107
    %v1588 = vpop.permute.xlu0 %1587
    %1589 = vrot.lane.b32.xlu0 %v1542, 107
    %v1590 = vpop.permute.xlu0 %1589
    %v1591 = vsel %vm1089, %v1588, %v1590
    %1594 = vrot.lane.b32.xlu0 %v1541, 106
    %v1595 = vpop.permute.xlu0 %1594
    %1596 = vrot.lane.b32.xlu0 %v1542, 106
    %v1597 = vpop.permute.xlu0 %1596
    %v1598 = vsel %vm1097, %v1595, %v1597
    %s1601 = scalar_lea.vmem %s1, 32
    %v1602 = vld [vmem:[%s1601] sm:$0xff]
    %s1603 = scalar_lea.vmem %s2, 32
    %v1604 = vld [vmem:[%s1603] sm:$0xff]
    %1606 = vset.pattern.permute.xlu0 0
    %1607 = vperm.xlu0 %1606, %v1604
    %v1608 = vpop.permute.xlu0 %1607
    %v1611 = vsel %vm242, %v1602, 0
    %1613 = vmatprep.subr.mxu0 %v1542
    %1614 = vmatpush1.msra.mxu0 %v1541
    %1615 = vmatprep.subr.mxu0 %v1548
    %1616 = vmatpush1.msra.mxu0 %v1549
    %1617 = vmatprep.subr.mxu0 %v1555
    %1618 = vmatpush1.msra.mxu0 %v1556
    %1619 = vmatprep.subr.mxu0 %v1562
    %1620 = vmatpush1.msra.mxu0 %v1563
    %1621 = vmatprep.subr.mxu0 %v1569
    %1622 = vmatpush1.msra.mxu0 %v1570
    %1623 = vmatprep.subr.mxu0 %v1576
    %1624 = vmatpush1.msra.mxu0 %v1577
    %1625 = vmatprep.subr.mxu0 %v1583
    %1626 = vmatpush1.msra.mxu0 %v1584
    %1627 = vmatprep.subr.mxu0 %v1590
    %1628 = vmatpush1.msra.mxu0 %v1591
    %1629 = vmatprep.subr.mxu0 %v1597
    %1630 = vmatpush1.msra.mxu0 %v1598
    %1631 = vmatprep.subr.mxu0 0.0
    %1632 = vmatpush1.msra.mxu0 0.0
    %1633 = vmatprep.subr.mxu0 0.0
    %1634 = vmatpush1.msra.mxu0 0.0
    %1635 = vmatprep.subr.mxu0 0.0
    %1636 = vmatpush1.msra.mxu0 0.0
    %1637 = vmatprep.subr.mxu0 0.0
    %1638 = vmatpush1.msra.mxu0 0.0
    %1639 = vmatprep.subr.mxu0 0.0
    %1640 = vmatpush1.msra.mxu0 0.0
    %1641 = vmatprep.subr.mxu0 0.0
    %1642 = vmatpush1.msra.mxu0 0.0
    %1643 = vmatprep.subr.mxu0 0.0
    %1644 = vmatpush1.msra.mxu0 0.0
    %1645 = vmatprep.subr.mxu0 0.0
    %1646 = vmatpush1.msra.mxu0 0.0
    %1647 = vmatprep.subr.mxu0 0.0
    %1648 = vmatpush1.msra.mxu0 0.0
    %1649 = vmatprep.subr.mxu0 0.0
    %1650 = vmatpush1.msra.mxu0 0.0
    %1651 = vmatprep.subr.mxu0 0.0
    %1652 = vmatpush1.msra.mxu0 0.0
    %1653 = vmatprep.subr.mxu0 0.0
    %1654 = vmatpush1.msra.mxu0 0.0
    %1655 = vmatprep.subr.mxu0 0.0
    %1656 = vmatpush1.msra.mxu0 0.0
    %1657 = vmatprep.subr.mxu0 0.0
    %1658 = vmatpush1.msra.mxu0 0.0
    %1659 = vmatprep.subr.mxu0 0.0
    %1660 = vmatpush1.msra.mxu0 0.0
    %1661 = vmatprep.subr.mxu0 0.0
    %1662 = vmatpush1.msra.mxu0 0.0
    %1663 = vmatprep.subr.mxu0 0.0
    %1664 = vmatpush1.msra.mxu0 0.0
    %1665 = vmatprep.subr.mxu0 0.0
    %1666 = vmatpush1.msra.mxu0 0.0
    %1667 = vmatprep.subr.mxu0 0.0
    %1668 = vmatpush1.msra.mxu0 0.0
    %1669 = vmatprep.subr.mxu0 0.0
    %1670 = vmatpush1.msra.mxu0 0.0
    %1671 = vmatprep.subr.mxu0 0.0
    %1672 = vmatpush1.msra.mxu0 0.0
    %1673 = vmatprep.subr.mxu0 0.0
    %1674 = vmatpush1.msra.mxu0 0.0
    %1675 = vmatprep.subr.mxu0 0.0
    %1676 = vmatpush1.msra.mxu0 0.0
    %1677 = vmatprep.mubr.f32.mxu0 0.0
    %1678 = vmatmul.mubr.f32.gmra.mrb[0].mxu0 %v1611
    %v1679 = vpop.f32.mrb[0].mxu0
    %v1680 = vadd.f32 %v1608, %v1679
    %v1681 = vpop.f32.mrb[0].mxu0
    %v1682 = vadd.f32 %v1608, %v1681
    %1683 = vdwg.mxu0
    %1686 = vrot.lane.b32.xlu0 %v1377, 117
    %v1687 = vpop.permute.xlu0 %1686
    %1688 = vrot.lane.b32.xlu0 %v1378, 117
    %v1689 = vpop.permute.xlu0 %1688
    %v1690 = vsel %vm1066, %v1687, %v1689
    %v1693 = vadd.f32 %v1680, %v1690
    %v1694 = vadd.f32 %v1682, %v1689
    %v1695 = vsel %vm1195, %v1693, 0.0
    %v1696 = vsel %vm1196, %v1694, 0.0
    %v1697 = vld [vmem:[%s4] sm:$0xff]
    %v1698 = vld [vmem:[%s4 + $0x8] sm:$0xff]
    %v1699 = vld [vmem:[%s4 + $0x10] sm:$0xff]
    %v1700 = vld [vmem:[%s4 + $0x18] sm:$0xff]
    %v1701 = vld [vmem:[%s4 + $0x20] sm:$0xff]
    %v1702 = vld [vmem:[%s4 + $0x28] sm:$0xff]
    %v1703 = vld [vmem:[%s4 + $0x30] sm:$0xff]
    %v1704 = vld [vmem:[%s4 + $0x38] sm:$0xff]
    %v1705 = vld [vmem:[%s4 + $0x40] sm:$0xff]
    %v1706 = vld [vmem:[%s4 + $0x48] sm:$0xff]
    %v1707 = vld [vmem:[%s4 + $0x50] sm:$0xff]
    %v1708 = vld [vmem:[%s4 + $0x58] sm:$0xff]
    %v1709 = vld [vmem:[%s4 + $0x60] sm:$0xff]
    %v1710 = vld [vmem:[%s4 + $0x68] sm:$0xff]
    %v1711 = vld [vmem:[%s4 + $0x70] sm:$0xff]
    %v1712 = vld [vmem:[%s4 + $0x78] sm:$0xff]
    %v1713 = vld [vmem:[%s4 + $0x80] sm:$0xff]
    %v1714 = vld [vmem:[%s4 + $0x88] sm:$0xff]
    %v1715 = vld [vmem:[%s4 + $0x90] sm:$0xff]
    %v1716 = vld [vmem:[%s4 + $0x98] sm:$0xff]
    %v1717 = vld [vmem:[%s4 + $0xa0] sm:$0xff]
    %v1718 = vld [vmem:[%s4 + $0xa8] sm:$0xff]
    %v1719 = vld [vmem:[%s4 + $0xb0] sm:$0xff]
    %v1720 = vld [vmem:[%s4 + $0xb8] sm:$0xff]
    %v1721 = vld [vmem:[%s4 + $0xc0] sm:$0xff]
    %v1723 = vsel %vm242, %v1696, 0
    %1725 = vmatprep.subr.mxu0 0.0
    %1726 = vmatpush1.msra.mxu0 %v1697
    %1727 = vmatprep.subr.mxu0 0.0
    %1728 = vmatpush1.msra.mxu0 %v1698
    %1729 = vmatprep.subr.mxu0 0.0
    %1730 = vmatpush1.msra.mxu0 %v1699
    %1731 = vmatprep.subr.mxu0 0.0
    %1732 = vmatpush1.msra.mxu0 %v1700
    %1733 = vmatprep.subr.mxu0 0.0
    %1734 = vmatpush1.msra.mxu0 %v1701
    %1735 = vmatprep.subr.mxu0 0.0
    %1736 = vmatpush1.msra.mxu0 %v1702
    %1737 = vmatprep.subr.mxu0 0.0
    %1738 = vmatpush1.msra.mxu0 %v1703
    %1739 = vmatprep.subr.mxu0 0.0
    %1740 = vmatpush1.msra.mxu0 %v1704
    %1741 = vmatprep.subr.mxu0 0.0
    %1742 = vmatpush1.msra.mxu0 %v1705
    %1743 = vmatprep.subr.mxu0 0.0
    %1744 = vmatpush1.msra.mxu0 %v1706
    %1745 = vmatprep.subr.mxu0 0.0
    %1746 = vmatpush1.msra.mxu0 %v1707
    %1747 = vmatprep.subr.mxu0 0.0
    %1748 = vmatpush1.msra.mxu0 %v1708
    %1749 = vmatprep.subr.mxu0 0.0
    %1750 = vmatpush1.msra.mxu0 %v1709
    %1751 = vmatprep.subr.mxu0 0.0
    %1752 = vmatpush1.msra.mxu0 %v1710
    %1753 = vmatprep.subr.mxu0 0.0
    %1754 = vmatpush1.msra.mxu0 %v1711
    %1755 = vmatprep.subr.mxu0 0.0
    %1756 = vmatpush1.msra.mxu0 %v1712
    %1757 = vmatprep.subr.mxu0 0.0
    %1758 = vmatpush1.msra.mxu0 %v1713
    %1759 = vmatprep.subr.mxu0 0.0
    %1760 = vmatpush1.msra.mxu0 %v1714
    %1761 = vmatprep.subr.mxu0 0.0
    %1762 = vmatpush1.msra.mxu0 %v1715
    %1763 = vmatprep.subr.mxu0 0.0
    %1764 = vmatpush1.msra.mxu0 %v1716
    %1765 = vmatprep.subr.mxu0 0.0
    %1766 = vmatpush1.msra.mxu0 %v1717
    %1767 = vmatprep.subr.mxu0 0.0
    %1768 = vmatpush1.msra.mxu0 %v1718
    %1769 = vmatprep.subr.mxu0 0.0
    %1770 = vmatpush1.msra.mxu0 %v1719
    %1771 = vmatprep.subr.mxu0 0.0
    %1772 = vmatpush1.msra.mxu0 %v1720
    %1773 = vmatprep.subr.mxu0 0.0
    %1774 = vmatpush1.msra.mxu0 %v1721
    %1775 = vmatprep.subr.mxu0 0.0
    %1776 = vmatpush1.msra.mxu0 0.0
    %1777 = vmatprep.subr.mxu0 0.0
    %1778 = vmatpush1.msra.mxu0 0.0
    %1779 = vmatprep.subr.mxu0 0.0
    %1780 = vmatpush1.msra.mxu0 0.0
    %1781 = vmatprep.subr.mxu0 0.0
    %1782 = vmatpush1.msra.mxu0 0.0
    %1783 = vmatprep.subr.mxu0 0.0
    %1784 = vmatpush1.msra.mxu0 0.0
    %1785 = vmatprep.subr.mxu0 0.0
    %1786 = vmatpush1.msra.mxu0 0.0
    %1787 = vmatprep.subr.mxu0 0.0
    %1788 = vmatpush1.msra.mxu0 0.0
    %1789 = vmatprep.mubr.f32.mxu0 %v1723
    %1790 = vmatmul.mubr.f32.gmra.mrb[0].mxu0 %v1695
    %v1791 = vpop.f32.mrb[0].mxu0
    %v1792 = vadd.f32 0.0, %v1791
    %v1793 = vpop.f32.mrb[0].mxu0
    %1794 = vdwg.mxu0
    %1795 = vst [vmem:[#allocation5] sm:$0xff] %v1792
    // Predicated region
    $region30: #{tpu_custom_call.1} parent=1 // pred_check
      _
    $region31: #{tpu_custom_call.1} parent=1 // pred_check_branch
      %1797 = sbr.rel (0) target = $region33
    $region32: #{tpu_custom_call.1} parent=1 // pred_region
      %s1799 = ssub.s32 128, 128
      %1800 = vsyncadd [#allocation6], %s1799
      %s1802 = sshll.u32 [#allocation5], 4
      %s1803 = int_to_ptr.vmem [resolvable:$true] %s1802
      %1805 = dma.vmem_to_hbm [thread:$0]  %s1803, 128, %s7, [#allocation6]
    $region33: #{tpu_custom_call.1} parent=1 // pred_fallthru
      _
    // Predicated region
    $region34: #{tpu_custom_call.1} parent=1 // pred_check
      _
    $region35: #{tpu_custom_call.1} parent=1 // pred_check_branch
      %1807 = sbr.rel (0) target = $region37
    $region36: #{tpu_custom_call.1} parent=1 // pred_region
      %1808 = dma.done [#allocation6], 128
    $region37: #{tpu_custom_call.1} parent=1 // pred_fallthru
      _
    %1809 = vsyncpa [#allocation6], 1

</llo_original>
